<compile_context>
chip_gen: v7x
topology: tpu7x:2x2x1
jax: 0.10.0
libtpu: 0.0.40
codegen_flags: <defaults>
</compile_context>

<pallas_src>
import functools
import math

import jax
import jax.numpy as jnp
from jax.experimental import pallas as pl
from jax.experimental.pallas import tpu as pltpu

# ----------------------------- model config (scaled-down roberta-base) ------
VOCAB = 64
MAX_POS = 24
TYPE_VOCAB = 2
HIDDEN = 32          # roberta-base: 768
INTERMEDIATE = 64    # roberta-base: 3072
NUM_LAYERS = 2       # roberta-base: 12
NUM_HEADS = 2        # roberta-base: 12
HEAD_DIM = HIDDEN // NUM_HEADS
NUM_CLASSES = 3
LN_EPS = 1e-5
PAD_IDX = 1          # RoBERTa padding_idx
CLS_PAD = 128        # lane-dense classifier output width

COMPUTE_DTYPE = jnp.bfloat16   # MXU path; stats/accumulation stay f32


def _pick(dim, pref=256):
    """MXU-aligned tile (256 for v6e/v7x); full dim when it does not divide.
    TODO(synk): re-derive tile budget for v7x's 64 MiB VMEM at base scale."""
    return pref if (dim > pref and dim % pref == 0) else dim


# ----------------------------- kernel: tiled linear (+bias, +activation) ----
def _linear_kernel(x_ref, w_ref, b_ref, o_ref, acc_ref, *, activation):
    k = pl.program_id(2)

    @pl.when(k == 0)
    def _():
        acc_ref[...] = jnp.zeros_like(acc_ref)

    acc_ref[...] += jnp.dot(x_ref[...], w_ref[...],
                            preferred_element_type=jnp.float32)

    @pl.when(k == pl.num_programs(2) - 1)
    def _():
        y = acc_ref[...] + b_ref[...].astype(jnp.float32)
        if activation == "gelu":
            # TODO(synk): HF RoBERTa uses exact erf-GELU; tanh approx here.
            y = jax.nn.gelu(y)
        elif activation == "tanh":
            y = jnp.tanh(y)
        o_ref[...] = y.astype(o_ref.dtype)


def pallas_linear(x, w, b, activation=None):
    M, K = x.shape
    N = w.shape[1]
    tm, tn, tk = _pick(M), _pick(N), _pick(K)
    kernel = functools.partial(_linear_kernel, activation=activation)
    return pl.pallas_call(
        kernel,
        out_shape=jax.ShapeDtypeStruct((M, N), x.dtype),
        grid_spec=pltpu.PrefetchScalarGridSpec(
            num_scalar_prefetch=0,
            grid=(M // tm, N // tn, K // tk),
            in_specs=[
                pl.BlockSpec((tm, tk), lambda i, j, k: (i, k)),
                pl.BlockSpec((tk, tn), lambda i, j, k: (k, j)),
                pl.BlockSpec((1, tn), lambda i, j, k: (0, j)),
            ],
            out_specs=pl.BlockSpec((tm, tn), lambda i, j, k: (i, j)),
            scratch_shapes=[pltpu.VMEM((tm, tn), jnp.float32)],
        ),
        compiler_params=pltpu.CompilerParams(
            dimension_semantics=("parallel", "parallel", "arbitrary")),
    )(x, w, b.reshape(1, N))


# ----------------------------- kernel: matmul + bias + residual + LayerNorm -
def _matmul_res_ln_kernel(x_ref, w_ref, b_ref, r_ref, g_ref, be_ref,
                          o_ref, acc_ref):
    k = pl.program_id(1)

    @pl.when(k == 0)
    def _():
        acc_ref[...] = jnp.zeros_like(acc_ref)

    acc_ref[...] += jnp.dot(x_ref[...], w_ref[...],
                            preferred_element_type=jnp.float32)

    @pl.when(k == pl.num_programs(1) - 1)
    def _():
        y = (acc_ref[...] + b_ref[...].astype(jnp.float32)
             + r_ref[...].astype(jnp.float32))
        mu = jnp.mean(y, axis=-1, keepdims=True)
        var = jnp.mean((y - mu) * (y - mu), axis=-1, keepdims=True)
        y = (y - mu) * jax.lax.rsqrt(var + LN_EPS)
        o_ref[...] = (y * g_ref[...] + be_ref[...]).astype(o_ref.dtype)


def pallas_matmul_residual_ln(x, w, b, residual, gamma, beta):
    M, K = x.shape
    N = w.shape[1]                      # full N resident (LN reduces over N)
    tm, tk = _pick(M), _pick(K)
    return pl.pallas_call(
        _matmul_res_ln_kernel,
        out_shape=jax.ShapeDtypeStruct((M, N), x.dtype),
        grid_spec=pltpu.PrefetchScalarGridSpec(
            num_scalar_prefetch=0,
            grid=(M // tm, K // tk),
            in_specs=[
                pl.BlockSpec((tm, tk), lambda i, k: (i, k)),
                pl.BlockSpec((tk, N), lambda i, k: (k, 0)),
                pl.BlockSpec((1, N), lambda i, k: (0, 0)),
                pl.BlockSpec((tm, N), lambda i, k: (i, 0)),
                pl.BlockSpec((1, N), lambda i, k: (0, 0)),
                pl.BlockSpec((1, N), lambda i, k: (0, 0)),
            ],
            out_specs=pl.BlockSpec((tm, N), lambda i, k: (i, 0)),
            scratch_shapes=[pltpu.VMEM((tm, N), jnp.float32)],
        ),
        compiler_params=pltpu.CompilerParams(
            dimension_semantics=("parallel", "arbitrary")),
    )(x, w, b.reshape(1, N), residual, gamma.reshape(1, N), beta.reshape(1, N))


# ----------------------------- kernel: fused FFN block ----------------------
def _ffn_kernel(x_ref, w1_ref, b1_ref, w2_ref, b2_ref, g_ref, be_ref, o_ref):
    x = x_ref[...]
    h = jnp.dot(x, w1_ref[...], preferred_element_type=jnp.float32)
    h = h + b1_ref[...].astype(jnp.float32)
    # TODO(synk): HF RoBERTa uses exact erf-GELU; tanh approx here.
    h = jax.nn.gelu(h)
    y = jnp.dot(h.astype(w2_ref.dtype), w2_ref[...],
                preferred_element_type=jnp.float32)
    y = y + b2_ref[...].astype(jnp.float32) + x.astype(jnp.float32)
    mu = jnp.mean(y, axis=-1, keepdims=True)
    var = jnp.mean((y - mu) * (y - mu), axis=-1, keepdims=True)
    y = (y - mu) * jax.lax.rsqrt(var + LN_EPS)
    o_ref[...] = (y * g_ref[...] + be_ref[...]).astype(o_ref.dtype)


def pallas_ffn_block(x, w1, b1, w2, b2, gamma, beta):
    M, H = x.shape
    I = w1.shape[1]
    tm = _pick(M)
    return pl.pallas_call(
        _ffn_kernel,
        out_shape=jax.ShapeDtypeStruct((M, H), x.dtype),
        grid_spec=pltpu.PrefetchScalarGridSpec(
            num_scalar_prefetch=0,
            grid=(M // tm,),
            in_specs=[
                pl.BlockSpec((tm, H), lambda i: (i, 0)),
                pl.BlockSpec((H, I), lambda i: (0, 0)),
                pl.BlockSpec((1, I), lambda i: (0, 0)),
                pl.BlockSpec((I, H), lambda i: (0, 0)),
                pl.BlockSpec((1, H), lambda i: (0, 0)),
                pl.BlockSpec((1, H), lambda i: (0, 0)),
                pl.BlockSpec((1, H), lambda i: (0, 0)),
            ],
            out_specs=pl.BlockSpec((tm, H), lambda i: (i, 0)),
        ),
        compiler_params=pltpu.CompilerParams(
            dimension_semantics=("parallel",)),
    )(x, w1, b1.reshape(1, I), w2, b2.reshape(1, H),
      gamma.reshape(1, H), beta.reshape(1, H))


# ----------------------------- kernel: LayerNorm (embeddings) ---------------
def _layernorm_kernel(x_ref, g_ref, b_ref, o_ref):
    x = x_ref[...].astype(jnp.float32)
    mu = jnp.mean(x, axis=-1, keepdims=True)
    var = jnp.mean((x - mu) * (x - mu), axis=-1, keepdims=True)
    y = (x - mu) * jax.lax.rsqrt(var + LN_EPS)
    o_ref[...] = (y * g_ref[...] + b_ref[...]).astype(o_ref.dtype)


def pallas_layernorm(x, gamma, beta):
    M, H = x.shape
    tm = _pick(M)
    return pl.pallas_call(
        _layernorm_kernel,
        out_shape=jax.ShapeDtypeStruct((M, H), x.dtype),
        grid_spec=pltpu.PrefetchScalarGridSpec(
            num_scalar_prefetch=0,
            grid=(M // tm,),
            in_specs=[pl.BlockSpec((tm, H), lambda i: (i, 0)),
                      pl.BlockSpec((1, H), lambda i: (0, 0)),
                      pl.BlockSpec((1, H), lambda i: (0, 0))],
            out_specs=pl.BlockSpec((tm, H), lambda i: (i, 0)),
        ),
        compiler_params=pltpu.CompilerParams(
            dimension_semantics=("parallel",)),
    )(x, gamma.reshape(1, H), beta.reshape(1, H))


# ----------------------------- kernel: fused multi-head self-attention ------
def _mhsa_kernel(qkv_ref, mask_ref, o_ref, *, num_heads, head_dim, scale):
    H = num_heads * head_dim
    qkv = qkv_ref[0]                                          # (S, 3H)
    # additive key mask, broadcast in-kernel (f32): (1, S)
    bias = (1.0 - mask_ref[0].astype(jnp.float32)) * -1e9
    ctx_heads = []
    for h in range(num_heads):                                # static unroll
        lo = h * head_dim
        qh = qkv[:, lo:lo + head_dim]
        kh = qkv[:, H + lo:H + lo + head_dim]
        vh = qkv[:, 2 * H + lo:2 * H + lo + head_dim]
        s = jax.lax.dot_general(                              # (S, S) f32
            qh, kh, (((1,), (1,)), ((), ())),
            preferred_element_type=jnp.float32) * scale
        s = s + bias
        m = jnp.max(s, axis=-1, keepdims=True)
        p = jnp.exp(s - m)
        denom = jnp.sum(p, axis=-1, keepdims=True)
        p = p * pl.reciprocal(denom, approx=True)             # EUP vrcp
        ctx = jnp.dot(p.astype(vh.dtype), vh,
                      preferred_element_type=jnp.float32)     # (S, hd)
        ctx_heads.append(ctx)
    o_ref[0] = jnp.concatenate(ctx_heads, axis=-1).astype(o_ref.dtype)


def pallas_mhsa(qkv, mask, num_heads, head_dim):
    B, S, threeH = qkv.shape
    H = num_heads * head_dim
    kernel = functools.partial(_mhsa_kernel, num_heads=num_heads,
                               head_dim=head_dim,
                               scale=1.0 / math.sqrt(head_dim))
    return pl.pallas_call(
        kernel,
        out_shape=jax.ShapeDtypeStruct((B, S, H), qkv.dtype),
        grid_spec=pltpu.PrefetchScalarGridSpec(
            num_scalar_prefetch=0,
            grid=(B,),
            in_specs=[pl.BlockSpec((1, S, threeH), lambda b: (b, 0, 0)),
                      pl.BlockSpec((1, 1, S), lambda b: (b, 0, 0))],
            out_specs=pl.BlockSpec((1, S, H), lambda b: (b, 0, 0)),
        ),
        compiler_params=pltpu.CompilerParams(
            dimension_semantics=("parallel",)),
    )(qkv, mask)


# ----------------------------- kernel: pooler + classifier (lane-dense) -----
def _pool_cls_kernel(x_ref, pw_ref, pb_ref, cw_ref, cb_ref, o_ref):
    pooled = jnp.dot(x_ref[...], pw_ref[...],
                     preferred_element_type=jnp.float32)
    pooled = jnp.tanh(pooled + pb_ref[...].astype(jnp.float32))
    logits = jnp.dot(pooled.astype(cw_ref.dtype), cw_ref[...],
                     preferred_element_type=jnp.float32)
    o_ref[...] = (logits + cb_ref[...].astype(jnp.float32)).astype(o_ref.dtype)


def pallas_pooler_classifier(h0, pw, pb, cw_pad, cb_pad):
    B, H = h0.shape
    Npad = cw_pad.shape[1]
    return pl.pallas_call(
        _pool_cls_kernel,
        out_shape=jax.ShapeDtypeStruct((B, Npad), jnp.float32),
        in_specs=[pl.BlockSpec(memory_space=pltpu.MemorySpace.VMEM)] * 5,
        out_specs=pl.BlockSpec(memory_space=pltpu.MemorySpace.VMEM),
    )(h0, pw, pb.reshape(1, H), cw_pad, cb_pad.reshape(1, Npad))


# ----------------------------- parameters -----------------------------------
def init_params(key):
    keys = iter(jax.random.split(key, 64))

    def w(shape, scale=0.02):
        return (scale * jax.random.normal(next(keys), shape)).astype(COMPUTE_DTYPE)

    def zeros(*shape):
        return jnp.zeros(shape, jnp.float32)

    def ones(*shape):
        return jnp.ones(shape, jnp.float32)

    cls_w = w((HIDDEN, NUM_CLASSES))
    cls_w_pad = jnp.zeros((HIDDEN, CLS_PAD), COMPUTE_DTYPE)
    cls_w_pad = cls_w_pad.at[:, :NUM_CLASSES].set(cls_w)
    cls_b_pad = jnp.zeros((CLS_PAD,), jnp.float32)

    params = {
        "word_emb": w((VOCAB, HIDDEN)),
        "pos_emb": w((MAX_POS, HIDDEN)),
        "type_emb": w((TYPE_VOCAB, HIDDEN)),
        "emb_ln_g": ones(HIDDEN), "emb_ln_b": zeros(HIDDEN),
        "layers": [],
        "pooler_w": w((HIDDEN, HIDDEN)), "pooler_b": zeros(HIDDEN),
        "cls_w_pad": cls_w_pad, "cls_b_pad": cls_b_pad,
    }
    for _ in range(NUM_LAYERS):
        qw, kw, vw = (w((HIDDEN, HIDDEN)), w((HIDDEN, HIDDEN)),
                      w((HIDDEN, HIDDEN)))
        params["layers"].append({
            "qkv_w": jnp.concatenate([qw, kw, vw], axis=1),   # (H, 3H) fused
            "qkv_b": zeros(3 * HIDDEN),
            "o_w": w((HIDDEN, HIDDEN)), "o_b": zeros(HIDDEN),
            "attn_ln_g": ones(HIDDEN), "attn_ln_b": zeros(HIDDEN),
            "ff1_w": w((HIDDEN, INTERMEDIATE)), "ff1_b": zeros(INTERMEDIATE),
            "ff2_w": w((INTERMEDIATE, HIDDEN)), "ff2_b": zeros(HIDDEN),
            "ff_ln_g": ones(HIDDEN), "ff_ln_b": zeros(HIDDEN),
        })
    return params


# ----------------------------- forward (glue + kernels) ---------------------
def roberta_classifier_forward(params, input_ids, attention_mask, token_type_ids):
    B, S = input_ids.shape
    H = HIDDEN

    # embeddings (gather stays XLA glue; LayerNorm is a kernel)
    mask_i = attention_mask.astype(jnp.int32)
    pos_ids = jnp.cumsum(mask_i, axis=1) * mask_i + PAD_IDX   # RoBERTa positions
    emb = (params["word_emb"][input_ids]
           + params["pos_emb"][pos_ids]
           + params["type_emb"][token_type_ids])
    h2d = pallas_layernorm(emb.reshape(B * S, H).astype(COMPUTE_DTYPE),
                           params["emb_ln_g"], params["emb_ln_b"])

    # (B,1,S) key mask, broadcast to bias INSIDE the attention kernel
    mask_f = attention_mask.astype(jnp.float32).reshape(B, 1, S)

    for lp in params["layers"]:
        qkv = pallas_linear(h2d, lp["qkv_w"], lp["qkv_b"])            # (B*S,3H)
        ctx = pallas_mhsa(qkv.reshape(B, S, 3 * H), mask_f,
                          NUM_HEADS, HEAD_DIM)                        # (B,S,H)
        h2d = pallas_matmul_residual_ln(ctx.reshape(B * S, H),
                                        lp["o_w"], lp["o_b"], h2d,
                                        lp["attn_ln_g"], lp["attn_ln_b"])
        h2d = pallas_ffn_block(h2d, lp["ff1_w"], lp["ff1_b"],
                               lp["ff2_w"], lp["ff2_b"],
                               lp["ff_ln_g"], lp["ff_ln_b"])

    h = h2d.reshape(B, S, H)
    # pooler: tanh(Linear(h[:,0,:])); classifier: Linear(H, num_classes)
    logits_pad = pallas_pooler_classifier(
        h[:, 0, :], params["pooler_w"], params["pooler_b"],
        params["cls_w_pad"], params["cls_b_pad"])
    return logits_pad[:, :NUM_CLASSES]


# ----------------------------- main ------------------------------------------
if __name__ == "__main__":
    key = jax.random.PRNGKey(0)
    pkey, ikey = jax.random.split(key)
    params = init_params(pkey)

    B, S = 2, 8
    input_ids = jax.random.randint(ikey, (B, S), 2, VOCAB).astype(jnp.int32)
    attention_mask = jnp.ones((B, S), jnp.int32)
    # last 2 tokens of second sequence are padding, to exercise the mask
    attention_mask = attention_mask.at[1, -2:].set(0)
    input_ids = jnp.where(attention_mask == 0, PAD_IDX, input_ids)
    token_type_ids = jnp.zeros((B, S), jnp.int32)

    fwd = jax.jit(roberta_classifier_forward)
    logits = fwd(params, input_ids, attention_mask, token_type_ids)
    logits = jax.block_until_ready(logits)
    assert logits.shape == (B, NUM_CLASSES)
    assert bool(jnp.all(jnp.isfinite(logits.astype(jnp.float32))))
    print("KERNEL_OK")
</pallas_src>

<mosaic_0001>
module attributes {stable_mosaic.version = 11 : i64} {
  func.func @_linear_kernel(%arg0: i32, %arg1: i32, %arg2: i32, %arg3: memref<16x32xbf16, #tpu.memory_space<vmem>>, %arg4: memref<32x96xbf16, #tpu.memory_space<vmem>>, %arg5: memref<1x96xf32, #tpu.memory_space<vmem>>, %arg6: memref<16x96xbf16, #tpu.memory_space<vmem>>, %arg7: memref<16x96xf32, #tpu.memory_space<vmem>>) attributes {dimension_semantics = [#tpu.dimension_semantics<parallel>, #tpu.dimension_semantics<parallel>, #tpu.dimension_semantics<arbitrary>], iteration_bounds = array<i64: 1, 1, 1>, scalar_prefetch = 0 : i64, scratch_operands = 1 : i64, tpu.core_type = #tpu.core_type<tc>, window_params = [{transform_indices = @transform_0, window_bounds = array<i64: 16, 32>}, {transform_indices = @transform_1, window_bounds = array<i64: 32, 96>}, {transform_indices = @transform_2, window_bounds = array<i64: 1, 96>}, {transform_indices = @transform_3, window_bounds = array<i64: 16, 96>}]} {
    %c0_i32 = arith.constant 0 : i32
    %0 = arith.cmpi eq, %arg2, %c0_i32 : i32
    %1 = arith.extui %0 : i1 to i32
    %c0_i32_0 = arith.constant 0 : i32
    %2 = arith.cmpi ne, %1, %c0_i32_0 : i32
    scf.if %2 {
      %cst_10 = arith.constant 0.000000e+00 : f32
      %12 = vector.broadcast %cst_10 : f32 to vector<16x96xf32>
      %c0_11 = arith.constant 0 : index
      %c0_12 = arith.constant 0 : index
      %13 = vector.load %arg7[%c0_11, %c0_12] : memref<16x96xf32, #tpu.memory_space<vmem>>, vector<16x96xf32>
      tpu.vector_store %arg7[%c0_11, %c0_12], %12 {strides = array<i32>} : memref<16x96xf32, #tpu.memory_space<vmem>>, vector<16x96xf32>,
    } else {
    }
    %c0 = arith.constant 0 : index
    %c0_1 = arith.constant 0 : index
    %3 = vector.load %arg7[%c0, %c0_1] : memref<16x96xf32, #tpu.memory_space<vmem>>, vector<16x96xf32>
    %c0_2 = arith.constant 0 : index
    %c0_3 = arith.constant 0 : index
    %4 = vector.load %arg3[%c0_2, %c0_3] : memref<16x32xbf16, #tpu.memory_space<vmem>>, vector<16x32xbf16>
    %c0_4 = arith.constant 0 : index
    %c0_5 = arith.constant 0 : index
    %5 = vector.load %arg4[%c0_4, %c0_5] : memref<32x96xbf16, #tpu.memory_space<vmem>>, vector<32x96xbf16>
    %cst = arith.constant dense<0.000000e+00> : vector<16x96xf32>
    %6 = tpu.matmul %4, %5, %cst {dimension_numbers = #tpu.dot_dimension_numbers<[1], [0], [0], [1], [0, 0, 1, 1], [], []>} : vector<16x32xbf16>, vector<32x96xbf16>, vector<16x96xf32> -> vector<16x96xf32>
    %7 = arith.addf %3, %6 : vector<16x96xf32>
    %c0_6 = arith.constant 0 : index
    %c0_7 = arith.constant 0 : index
    %8 = vector.load %arg7[%c0_6, %c0_7] : memref<16x96xf32, #tpu.memory_space<vmem>>, vector<16x96xf32>
    tpu.vector_store %arg7[%c0_6, %c0_7], %7 {strides = array<i32>} : memref<16x96xf32, #tpu.memory_space<vmem>>, vector<16x96xf32>,
    %c0_i32_8 = arith.constant 0 : i32
    %9 = arith.cmpi eq, %arg2, %c0_i32_8 : i32
    %10 = arith.extui %9 : i1 to i32
    %c0_i32_9 = arith.constant 0 : i32
    %11 = arith.cmpi ne, %10, %c0_i32_9 : i32
    scf.if %11 {
      %c0_10 = arith.constant 0 : index
      %c0_11 = arith.constant 0 : index
      %12 = vector.load %arg7[%c0_10, %c0_11] : memref<16x96xf32, #tpu.memory_space<vmem>>, vector<16x96xf32>
      %c0_12 = arith.constant 0 : index
      %c0_13 = arith.constant 0 : index
      %13 = vector.load %arg5[%c0_12, %c0_13] : memref<1x96xf32, #tpu.memory_space<vmem>>, vector<1x96xf32>
      %14 = vector.broadcast %13 : vector<1x96xf32> to vector<16x96xf32>
      %15 = arith.addf %12, %14 : vector<16x96xf32>
      %16 = arith.truncf %15 : vector<16x96xf32> to vector<16x96xbf16>
      %c0_14 = arith.constant 0 : index
      %c0_15 = arith.constant 0 : index
      %17 = vector.load %arg6[%c0_14, %c0_15] : memref<16x96xbf16, #tpu.memory_space<vmem>>, vector<16x96xbf16>
      tpu.vector_store %arg6[%c0_14, %c0_15], %16 {strides = array<i32>} : memref<16x96xbf16, #tpu.memory_space<vmem>>, vector<16x96xbf16>,
    } else {
    }
    return
  }
  func.func @transform_0(%arg0: i32, %arg1: i32, %arg2: i32) -> (i32, i32) {
    %c0_i32 = arith.constant 0 : i32
    return %arg0, %arg2 : i32, i32
  }
  func.func @transform_1(%arg0: i32, %arg1: i32, %arg2: i32) -> (i32, i32) {
    %c0_i32 = arith.constant 0 : i32
    return %arg2, %arg1 : i32, i32
  }
  func.func @transform_2(%arg0: i32, %arg1: i32, %arg2: i32) -> (i32, i32) {
    %c0_i32 = arith.constant 0 : i32
    %c0_i32_0 = arith.constant 0 : i32
    return %c0_i32, %arg1 : i32, i32
  }
  func.func @transform_3(%arg0: i32, %arg1: i32, %arg2: i32) -> (i32, i32) {
    %c0_i32 = arith.constant 0 : i32
    return %arg0, %arg1 : i32, i32
  }
}

module attributes {stable_mosaic.version = 11 : i64} {
  func.func @_mhsa_kernel(%arg0: i32, %arg1: memref<1x8x96xbf16, #tpu.memory_space<vmem>>, %arg2: memref<1x1x8xf32, #tpu.memory_space<vmem>>, %arg3: memref<1x8x32xbf16, #tpu.memory_space<vmem>>) attributes {dimension_semantics = [#tpu.dimension_semantics<parallel>], iteration_bounds = array<i64: 2>, scalar_prefetch = 0 : i64, scratch_operands = 0 : i64, tpu.core_type = #tpu.core_type<tc>, window_params = [{transform_indices = @transform_0, window_bounds = array<i64: 1, 8, 96>}, {transform_indices = @transform_1, window_bounds = array<i64: 1, 1, 8>}, {transform_indices = @transform_2, window_bounds = array<i64: 1, 8, 32>}]} {
    %c0 = arith.constant 0 : index
    %c0_0 = arith.constant 0 : index
    %c0_1 = arith.constant 0 : index
    %0 = vector.load %arg1[%c0, %c0_0, %c0_1] : memref<1x8x96xbf16, #tpu.memory_space<vmem>>, vector<1x8x96xbf16>
    %1 = vector.shape_cast %0 : vector<1x8x96xbf16> to vector<8x96xbf16>
    %c0_2 = arith.constant 0 : index
    %c0_3 = arith.constant 0 : index
    %c0_4 = arith.constant 0 : index
    %2 = vector.load %arg2[%c0_2, %c0_3, %c0_4] : memref<1x1x8xf32, #tpu.memory_space<vmem>>, vector<1x1x8xf32>
    %3 = vector.shape_cast %2 : vector<1x1x8xf32> to vector<1x8xf32>
    %cst = arith.constant 1.000000e+00 : f32
    %4 = vector.broadcast %cst : f32 to vector<1x8xf32>
    %5 = arith.subf %4, %3 : vector<1x8xf32>
    %cst_5 = arith.constant -1.000000e+09 : f32
    %6 = vector.broadcast %cst_5 : f32 to vector<1x8xf32>
    %7 = arith.mulf %5, %6 : vector<1x8xf32>
    %8 = vector.extract_strided_slice %1 {offsets = [0, 0], sizes = [8, 16], strides = [1, 1]} : vector<8x96xbf16> to vector<8x16xbf16>
    %9 = vector.extract_strided_slice %1 {offsets = [0, 32], sizes = [8, 16], strides = [1, 1]} : vector<8x96xbf16> to vector<8x16xbf16>
    %10 = vector.extract_strided_slice %1 {offsets = [0, 64], sizes = [8, 16], strides = [1, 1]} : vector<8x96xbf16> to vector<8x16xbf16>
    %cst_6 = arith.constant dense<0.000000e+00> : vector<8x8xf32>
    %11 = tpu.matmul %8, %9, %cst_6 {dimension_numbers = #tpu.dot_dimension_numbers<[1], [1], [0], [0], [0, 0, 1, 0], [], []>} : vector<8x16xbf16>, vector<8x16xbf16>, vector<8x8xf32> -> vector<8x8xf32>
    %cst_7 = arith.constant 2.500000e-01 : f32
    %12 = vector.broadcast %cst_7 : f32 to vector<8x8xf32>
    %13 = arith.mulf %11, %12 : vector<8x8xf32>
    %14 = vector.broadcast %7 : vector<1x8xf32> to vector<8x8xf32>
    %15 = arith.addf %13, %14 : vector<8x8xf32>
    %cst_8 = arith.constant dense<0xFF800000> : vector<8xf32>
    %16 = vector.multi_reduction <maximumf>, %15, %cst_8 [1] : vector<8x8xf32> to vector<8xf32>
    %17 = vector.shape_cast %16 : vector<8xf32> to vector<8x1xf32>
    %18 = vector.broadcast %17 : vector<8x1xf32> to vector<8x8xf32>
    %19 = arith.subf %15, %18 : vector<8x8xf32>
    %20 = math.exp %19 : vector<8x8xf32>
    %cst_9 = arith.constant dense<0.000000e+00> : vector<8xf32>
    %21 = vector.multi_reduction <add>, %20, %cst_9 [1] : vector<8x8xf32> to vector<8xf32>
    %22 = vector.shape_cast %21 : vector<8xf32> to vector<8x1xf32>
    %23 = tpu.reciprocal %22 {approx = true} : vector<8x1xf32> -> vector<8x1xf32>
    %24 = vector.broadcast %23 : vector<8x1xf32> to vector<8x8xf32>
    %25 = arith.mulf %20, %24 : vector<8x8xf32>
    %26 = arith.truncf %25 : vector<8x8xf32> to vector<8x8xbf16>
    %cst_10 = arith.constant dense<0.000000e+00> : vector<8x16xf32>
    %27 = tpu.matmul %26, %10, %cst_10 {dimension_numbers = #tpu.dot_dimension_numbers<[1], [0], [0], [1], [0, 0, 1, 1], [], []>} : vector<8x8xbf16>, vector<8x16xbf16>, vector<8x16xf32> -> vector<8x16xf32>
    %28 = vector.extract_strided_slice %1 {offsets = [0, 16], sizes = [8, 16], strides = [1, 1]} : vector<8x96xbf16> to vector<8x16xbf16>
    %29 = vector.extract_strided_slice %1 {offsets = [0, 48], sizes = [8, 16], strides = [1, 1]} : vector<8x96xbf16> to vector<8x16xbf16>
    %30 = vector.extract_strided_slice %1 {offsets = [0, 80], sizes = [8, 16], strides = [1, 1]} : vector<8x96xbf16> to vector<8x16xbf16>
    %cst_11 = arith.constant dense<0.000000e+00> : vector<8x8xf32>
    %31 = tpu.matmul %28, %29, %cst_11 {dimension_numbers = #tpu.dot_dimension_numbers<[1], [1], [0], [0], [0, 0, 1, 0], [], []>} : vector<8x16xbf16>, vector<8x16xbf16>, vector<8x8xf32> -> vector<8x8xf32>
    %cst_12 = arith.constant 2.500000e-01 : f32
    %32 = vector.broadcast %cst_12 : f32 to vector<8x8xf32>
    %33 = arith.mulf %31, %32 : vector<8x8xf32>
    %34 = vector.broadcast %7 : vector<1x8xf32> to vector<8x8xf32>
    %35 = arith.addf %33, %34 : vector<8x8xf32>
    %cst_13 = arith.constant dense<0xFF800000> : vector<8xf32>
    %36 = vector.multi_reduction <maximumf>, %35, %cst_13 [1] : vector<8x8xf32> to vector<8xf32>
    %37 = vector.shape_cast %36 : vector<8xf32> to vector<8x1xf32>
    %38 = vector.broadcast %37 : vector<8x1xf32> to vector<8x8xf32>
    %39 = arith.subf %35, %38 : vector<8x8xf32>
    %40 = math.exp %39 : vector<8x8xf32>
    %cst_14 = arith.constant dense<0.000000e+00> : vector<8xf32>
    %41 = vector.multi_reduction <add>, %40, %cst_14 [1] : vector<8x8xf32> to vector<8xf32>
    %42 = vector.shape_cast %41 : vector<8xf32> to vector<8x1xf32>
    %43 = tpu.reciprocal %42 {approx = true} : vector<8x1xf32> -> vector<8x1xf32>
    %44 = vector.broadcast %43 : vector<8x1xf32> to vector<8x8xf32>
    %45 = arith.mulf %40, %44 : vector<8x8xf32>
    %46 = arith.truncf %45 : vector<8x8xf32> to vector<8x8xbf16>
    %cst_15 = arith.constant dense<0.000000e+00> : vector<8x16xf32>
    %47 = tpu.matmul %46, %30, %cst_15 {dimension_numbers = #tpu.dot_dimension_numbers<[1], [0], [0], [1], [0, 0, 1, 1], [], []>} : vector<8x8xbf16>, vector<8x16xbf16>, vector<8x16xf32> -> vector<8x16xf32>
    %48 = tpu.concatenate %27, %47 in 1 : vector<8x16xf32>, vector<8x16xf32> -> vector<8x32xf32>
    %49 = arith.truncf %48 : vector<8x32xf32> to vector<8x32xbf16>
    %c0_16 = arith.constant 0 : index
    %c0_17 = arith.constant 0 : index
    %c0_18 = arith.constant 0 : index
    %50 = vector.load %arg3[%c0_16, %c0_17, %c0_18] : memref<1x8x32xbf16, #tpu.memory_space<vmem>>, vector<1x8x32xbf16>
    %51 = vector.shape_cast %50 : vector<1x8x32xbf16> to vector<8x32xbf16>
    %52 = vector.shape_cast %49 : vector<8x32xbf16> to vector<1x8x32xbf16>
    tpu.vector_store %arg3[%c0_16, %c0_17, %c0_18], %52 {strides = array<i32>} : memref<1x8x32xbf16, #tpu.memory_space<vmem>>, vector<1x8x32xbf16>,
    return
  }
  func.func @transform_0(%arg0: i32) -> (i32, i32, i32) {
    %c0_i32 = arith.constant 0 : i32
    %c0_i32_0 = arith.constant 0 : i32
    %c0_i32_1 = arith.constant 0 : i32
    return %arg0, %c0_i32, %c0_i32_0 : i32, i32, i32
  }
  func.func @transform_1(%arg0: i32) -> (i32, i32, i32) {
    %c0_i32 = arith.constant 0 : i32
    %c0_i32_0 = arith.constant 0 : i32
    %c0_i32_1 = arith.constant 0 : i32
    return %arg0, %c0_i32, %c0_i32_0 : i32, i32, i32
  }
  func.func @transform_2(%arg0: i32) -> (i32, i32, i32) {
    %c0_i32 = arith.constant 0 : i32
    %c0_i32_0 = arith.constant 0 : i32
    %c0_i32_1 = arith.constant 0 : i32
    return %arg0, %c0_i32, %c0_i32_0 : i32, i32, i32
  }
}

module attributes {stable_mosaic.version = 11 : i64} {
  func.func @_layernorm_kernel(%arg0: i32, %arg1: memref<16x32xbf16, #tpu.memory_space<vmem>>, %arg2: memref<1x32xf32, #tpu.memory_space<vmem>>, %arg3: memref<1x32xf32, #tpu.memory_space<vmem>>, %arg4: memref<16x32xbf16, #tpu.memory_space<vmem>>) attributes {dimension_semantics = [#tpu.dimension_semantics<parallel>], iteration_bounds = array<i64: 1>, scalar_prefetch = 0 : i64, scratch_operands = 0 : i64, tpu.core_type = #tpu.core_type<tc>, window_params = [{transform_indices = @transform_0, window_bounds = array<i64: 16, 32>}, {pipeline_mode = #tpu.pipeline_mode<synchronous>, transform_indices = @transform_1, window_bounds = array<i64: 1, 32>}, {pipeline_mode = #tpu.pipeline_mode<synchronous>, transform_indices = @transform_2, window_bounds = array<i64: 1, 32>}, {transform_indices = @transform_3, window_bounds = array<i64: 16, 32>}]} {
    %c0 = arith.constant 0 : index
    %c0_0 = arith.constant 0 : index
    %0 = vector.load %arg1[%c0, %c0_0] : memref<16x32xbf16, #tpu.memory_space<vmem>>, vector<16x32xbf16>
    %1 = arith.extf %0 : vector<16x32xbf16> to vector<16x32xf32>
    %cst = arith.constant dense<0.000000e+00> : vector<16xf32>
    %2 = vector.multi_reduction <add>, %1, %cst [1] : vector<16x32xf32> to vector<16xf32>
    %3 = vector.shape_cast %2 : vector<16xf32> to vector<16x1xf32>
    %cst_1 = arith.constant 3.200000e+01 : f32
    %4 = vector.broadcast %cst_1 : f32 to vector<16x1xf32>
    %5 = arith.divf %3, %4 : vector<16x1xf32>
    %6 = vector.broadcast %5 : vector<16x1xf32> to vector<16x32xf32>
    %7 = arith.subf %1, %6 : vector<16x32xf32>
    %8 = vector.broadcast %5 : vector<16x1xf32> to vector<16x32xf32>
    %9 = arith.subf %1, %8 : vector<16x32xf32>
    %10 = arith.mulf %7, %9 : vector<16x32xf32>
    %cst_2 = arith.constant dense<0.000000e+00> : vector<16xf32>
    %11 = vector.multi_reduction <add>, %10, %cst_2 [1] : vector<16x32xf32> to vector<16xf32>
    %12 = vector.shape_cast %11 : vector<16xf32> to vector<16x1xf32>
    %cst_3 = arith.constant 3.200000e+01 : f32
    %13 = vector.broadcast %cst_3 : f32 to vector<16x1xf32>
    %14 = arith.divf %12, %13 : vector<16x1xf32>
    %15 = vector.broadcast %5 : vector<16x1xf32> to vector<16x32xf32>
    %16 = arith.subf %1, %15 : vector<16x32xf32>
    %cst_4 = arith.constant 9.99999974E-6 : f32
    %17 = vector.broadcast %cst_4 : f32 to vector<16x1xf32>
    %18 = arith.addf %14, %17 : vector<16x1xf32>
    %19 = math.rsqrt %18 : vector<16x1xf32>
    %20 = vector.broadcast %19 : vector<16x1xf32> to vector<16x32xf32>
    %21 = arith.mulf %16, %20 : vector<16x32xf32>
    %c0_5 = arith.constant 0 : index
    %c0_6 = arith.constant 0 : index
    %22 = vector.load %arg2[%c0_5, %c0_6] : memref<1x32xf32, #tpu.memory_space<vmem>>, vector<1x32xf32>
    %23 = vector.broadcast %22 : vector<1x32xf32> to vector<16x32xf32>
    %24 = arith.mulf %21, %23 : vector<16x32xf32>
    %c0_7 = arith.constant 0 : index
    %c0_8 = arith.constant 0 : index
    %25 = vector.load %arg3[%c0_7, %c0_8] : memref<1x32xf32, #tpu.memory_space<vmem>>, vector<1x32xf32>
    %26 = vector.broadcast %25 : vector<1x32xf32> to vector<16x32xf32>
    %27 = arith.addf %24, %26 : vector<16x32xf32>
    %28 = arith.truncf %27 : vector<16x32xf32> to vector<16x32xbf16>
    %c0_9 = arith.constant 0 : index
    %c0_10 = arith.constant 0 : index
    %29 = vector.load %arg4[%c0_9, %c0_10] : memref<16x32xbf16, #tpu.memory_space<vmem>>, vector<16x32xbf16>
    tpu.vector_store %arg4[%c0_9, %c0_10], %28 {strides = array<i32>} : memref<16x32xbf16, #tpu.memory_space<vmem>>, vector<16x32xbf16>,
    return
  }
  func.func @transform_0(%arg0: i32) -> (i32, i32) {
    %c0_i32 = arith.constant 0 : i32
    %c0_i32_0 = arith.constant 0 : i32
    return %arg0, %c0_i32 : i32, i32
  }
  func.func @transform_1(%arg0: i32) -> (i32, i32) {
    %c0_i32 = arith.constant 0 : i32
    %c0_i32_0 = arith.constant 0 : i32
    %c0_i32_1 = arith.constant 0 : i32
    return %c0_i32, %c0_i32_0 : i32, i32
  }
  func.func @transform_2(%arg0: i32) -> (i32, i32) {
    %c0_i32 = arith.constant 0 : i32
    %c0_i32_0 = arith.constant 0 : i32
    %c0_i32_1 = arith.constant 0 : i32
    return %c0_i32, %c0_i32_0 : i32, i32
  }
  func.func @transform_3(%arg0: i32) -> (i32, i32) {
    %c0_i32 = arith.constant 0 : i32
    %c0_i32_0 = arith.constant 0 : i32
    return %arg0, %c0_i32 : i32, i32
  }
}

module attributes {stable_mosaic.version = 11 : i64} {
  func.func @_matmul_res_ln_kernel(%arg0: i32, %arg1: i32, %arg2: memref<16x32xbf16, #tpu.memory_space<vmem>>, %arg3: memref<32x32xbf16, #tpu.memory_space<vmem>>, %arg4: memref<1x32xf32, #tpu.memory_space<vmem>>, %arg5: memref<16x32xbf16, #tpu.memory_space<vmem>>, %arg6: memref<1x32xf32, #tpu.memory_space<vmem>>, %arg7: memref<1x32xf32, #tpu.memory_space<vmem>>, %arg8: memref<16x32xbf16, #tpu.memory_space<vmem>>, %arg9: memref<16x32xf32, #tpu.memory_space<vmem>>) attributes {dimension_semantics = [#tpu.dimension_semantics<parallel>, #tpu.dimension_semantics<arbitrary>], iteration_bounds = array<i64: 1, 1>, scalar_prefetch = 0 : i64, scratch_operands = 1 : i64, tpu.core_type = #tpu.core_type<tc>, window_params = [{transform_indices = @transform_0, window_bounds = array<i64: 16, 32>}, {transform_indices = @transform_1, window_bounds = array<i64: 32, 32>}, {pipeline_mode = #tpu.pipeline_mode<synchronous>, transform_indices = @transform_2, window_bounds = array<i64: 1, 32>}, {transform_indices = @transform_3, window_bounds = array<i64: 16, 32>}, {pipeline_mode = #tpu.pipeline_mode<synchronous>, transform_indices = @transform_4, window_bounds = array<i64: 1, 32>}, {pipeline_mode = #tpu.pipeline_mode<synchronous>, transform_indices = @transform_5, window_bounds = array<i64: 1, 32>}, {transform_indices = @transform_6, window_bounds = array<i64: 16, 32>}]} {
    %c0_i32 = arith.constant 0 : i32
    %0 = arith.cmpi eq, %arg1, %c0_i32 : i32
    %1 = arith.extui %0 : i1 to i32
    %c0_i32_0 = arith.constant 0 : i32
    %2 = arith.cmpi ne, %1, %c0_i32_0 : i32
    scf.if %2 {
      %cst_10 = arith.constant 0.000000e+00 : f32
      %12 = vector.broadcast %cst_10 : f32 to vector<16x32xf32>
      %c0_11 = arith.constant 0 : index
      %c0_12 = arith.constant 0 : index
      %13 = vector.load %arg9[%c0_11, %c0_12] : memref<16x32xf32, #tpu.memory_space<vmem>>, vector<16x32xf32>
      tpu.vector_store %arg9[%c0_11, %c0_12], %12 {strides = array<i32>} : memref<16x32xf32, #tpu.memory_space<vmem>>, vector<16x32xf32>,
    } else {
    }
    %c0 = arith.constant 0 : index
    %c0_1 = arith.constant 0 : index
    %3 = vector.load %arg9[%c0, %c0_1] : memref<16x32xf32, #tpu.memory_space<vmem>>, vector<16x32xf32>
    %c0_2 = arith.constant 0 : index
    %c0_3 = arith.constant 0 : index
    %4 = vector.load %arg2[%c0_2, %c0_3] : memref<16x32xbf16, #tpu.memory_space<vmem>>, vector<16x32xbf16>
    %c0_4 = arith.constant 0 : index
    %c0_5 = arith.constant 0 : index
    %5 = vector.load %arg3[%c0_4, %c0_5] : memref<32x32xbf16, #tpu.memory_space<vmem>>, vector<32x32xbf16>
    %cst = arith.constant dense<0.000000e+00> : vector<16x32xf32>
    %6 = tpu.matmul %4, %5, %cst {dimension_numbers = #tpu.dot_dimension_numbers<[1], [0], [0], [1], [0, 0, 1, 1], [], []>} : vector<16x32xbf16>, vector<32x32xbf16>, vector<16x32xf32> -> vector<16x32xf32>
    %7 = arith.addf %3, %6 : vector<16x32xf32>
    %c0_6 = arith.constant 0 : index
    %c0_7 = arith.constant 0 : index
    %8 = vector.load %arg9[%c0_6, %c0_7] : memref<16x32xf32, #tpu.memory_space<vmem>>, vector<16x32xf32>
    tpu.vector_store %arg9[%c0_6, %c0_7], %7 {strides = array<i32>} : memref<16x32xf32, #tpu.memory_space<vmem>>, vector<16x32xf32>,
    %c0_i32_8 = arith.constant 0 : i32
    %9 = arith.cmpi eq, %arg1, %c0_i32_8 : i32
    %10 = arith.extui %9 : i1 to i32
    %c0_i32_9 = arith.constant 0 : i32
    %11 = arith.cmpi ne, %10, %c0_i32_9 : i32
    scf.if %11 {
      %c0_10 = arith.constant 0 : index
      %c0_11 = arith.constant 0 : index
      %12 = vector.load %arg9[%c0_10, %c0_11] : memref<16x32xf32, #tpu.memory_space<vmem>>, vector<16x32xf32>
      %c0_12 = arith.constant 0 : index
      %c0_13 = arith.constant 0 : index
      %13 = vector.load %arg4[%c0_12, %c0_13] : memref<1x32xf32, #tpu.memory_space<vmem>>, vector<1x32xf32>
      %14 = vector.broadcast %13 : vector<1x32xf32> to vector<16x32xf32>
      %15 = arith.addf %12, %14 : vector<16x32xf32>
      %c0_14 = arith.constant 0 : index
      %c0_15 = arith.constant 0 : index
      %16 = vector.load %arg5[%c0_14, %c0_15] : memref<16x32xbf16, #tpu.memory_space<vmem>>, vector<16x32xbf16>
      %17 = arith.extf %16 : vector<16x32xbf16> to vector<16x32xf32>
      %18 = arith.addf %15, %17 : vector<16x32xf32>
      %cst_16 = arith.constant dense<0.000000e+00> : vector<16xf32>
      %19 = vector.multi_reduction <add>, %18, %cst_16 [1] : vector<16x32xf32> to vector<16xf32>
      %20 = vector.shape_cast %19 : vector<16xf32> to vector<16x1xf32>
      %cst_17 = arith.constant 3.200000e+01 : f32
      %21 = vector.broadcast %cst_17 : f32 to vector<16x1xf32>
      %22 = arith.divf %20, %21 : vector<16x1xf32>
      %23 = vector.broadcast %22 : vector<16x1xf32> to vector<16x32xf32>
      %24 = arith.subf %18, %23 : vector<16x32xf32>
      %25 = vector.broadcast %22 : vector<16x1xf32> to vector<16x32xf32>
      %26 = arith.subf %18, %25 : vector<16x32xf32>
      %27 = arith.mulf %24, %26 : vector<16x32xf32>
      %cst_18 = arith.constant dense<0.000000e+00> : vector<16xf32>
      %28 = vector.multi_reduction <add>, %27, %cst_18 [1] : vector<16x32xf32> to vector<16xf32>
      %29 = vector.shape_cast %28 : vector<16xf32> to vector<16x1xf32>
      %cst_19 = arith.constant 3.200000e+01 : f32
      %30 = vector.broadcast %cst_19 : f32 to vector<16x1xf32>
      %31 = arith.divf %29, %30 : vector<16x1xf32>
      %32 = vector.broadcast %22 : vector<16x1xf32> to vector<16x32xf32>
      %33 = arith.subf %18, %32 : vector<16x32xf32>
      %cst_20 = arith.constant 9.99999974E-6 : f32
      %34 = vector.broadcast %cst_20 : f32 to vector<16x1xf32>
      %35 = arith.addf %31, %34 : vector<16x1xf32>
      %36 = math.rsqrt %35 : vector<16x1xf32>
      %37 = vector.broadcast %36 : vector<16x1xf32> to vector<16x32xf32>
      %38 = arith.mulf %33, %37 : vector<16x32xf32>
      %c0_21 = arith.constant 0 : index
      %c0_22 = arith.constant 0 : index
      %39 = vector.load %arg6[%c0_21, %c0_22] : memref<1x32xf32, #tpu.memory_space<vmem>>, vector<1x32xf32>
      %40 = vector.broadcast %39 : vector<1x32xf32> to vector<16x32xf32>
      %41 = arith.mulf %38, %40 : vector<16x32xf32>
      %c0_23 = arith.constant 0 : index
      %c0_24 = arith.constant 0 : index
      %42 = vector.load %arg7[%c0_23, %c0_24] : memref<1x32xf32, #tpu.memory_space<vmem>>, vector<1x32xf32>
      %43 = vector.broadcast %42 : vector<1x32xf32> to vector<16x32xf32>
      %44 = arith.addf %41, %43 : vector<16x32xf32>
      %45 = arith.truncf %44 : vector<16x32xf32> to vector<16x32xbf16>
      %c0_25 = arith.constant 0 : index
      %c0_26 = arith.constant 0 : index
      %46 = vector.load %arg8[%c0_25, %c0_26] : memref<16x32xbf16, #tpu.memory_space<vmem>>, vector<16x32xbf16>
      tpu.vector_store %arg8[%c0_25, %c0_26], %45 {strides = array<i32>} : memref<16x32xbf16, #tpu.memory_space<vmem>>, vector<16x32xbf16>,
    } else {
    }
    return
  }
  func.func @transform_0(%arg0: i32, %arg1: i32) -> (i32, i32) {
    %c0_i32 = arith.constant 0 : i32
    return %arg0, %arg1 : i32, i32
  }
  func.func @transform_1(%arg0: i32, %arg1: i32) -> (i32, i32) {
    %c0_i32 = arith.constant 0 : i32
    %c0_i32_0 = arith.constant 0 : i32
    return %arg1, %c0_i32 : i32, i32
  }
  func.func @transform_2(%arg0: i32, %arg1: i32) -> (i32, i32) {
    %c0_i32 = arith.constant 0 : i32
    %c0_i32_0 = arith.constant 0 : i32
    %c0_i32_1 = arith.constant 0 : i32
    return %c0_i32, %c0_i32_0 : i32, i32
  }
  func.func @transform_3(%arg0: i32, %arg1: i32) -> (i32, i32) {
    %c0_i32 = arith.constant 0 : i32
    %c0_i32_0 = arith.constant 0 : i32
    return %arg0, %c0_i32 : i32, i32
  }
  func.func @transform_4(%arg0: i32, %arg1: i32) -> (i32, i32) {
    %c0_i32 = arith.constant 0 : i32
    %c0_i32_0 = arith.constant 0 : i32
    %c0_i32_1 = arith.constant 0 : i32
    return %c0_i32, %c0_i32_0 : i32, i32
  }
  func.func @transform_5(%arg0: i32, %arg1: i32) -> (i32, i32) {
    %c0_i32 = arith.constant 0 : i32
    %c0_i32_0 = arith.constant 0 : i32
    %c0_i32_1 = arith.constant 0 : i32
    return %c0_i32, %c0_i32_0 : i32, i32
  }
  func.func @transform_6(%arg0: i32, %arg1: i32) -> (i32, i32) {
    %c0_i32 = arith.constant 0 : i32
    %c0_i32_0 = arith.constant 0 : i32
    return %arg0, %c0_i32 : i32, i32
  }
}

module attributes {stable_mosaic.version = 11 : i64} {
  func.func @_pool_cls_kernel(%arg0: memref<2x32xbf16, #tpu.memory_space<vmem>>, %arg1: memref<32x32xbf16, #tpu.memory_space<vmem>>, %arg2: memref<1x32xf32, #tpu.memory_space<vmem>>, %arg3: memref<32x128xbf16, #tpu.memory_space<vmem>>, %arg4: memref<1x128xf32, #tpu.memory_space<vmem>>, %arg5: memref<2x128xf32, #tpu.memory_space<vmem>>) attributes {dimension_semantics = [], scalar_prefetch = 0 : i64, scratch_operands = 0 : i64, tpu.core_type = #tpu.core_type<tc>} {
    %c0 = arith.constant 0 : index
    %c0_0 = arith.constant 0 : index
    %0 = vector.load %arg0[%c0, %c0_0] : memref<2x32xbf16, #tpu.memory_space<vmem>>, vector<2x32xbf16>
    %c0_1 = arith.constant 0 : index
    %c0_2 = arith.constant 0 : index
    %1 = vector.load %arg1[%c0_1, %c0_2] : memref<32x32xbf16, #tpu.memory_space<vmem>>, vector<32x32xbf16>
    %cst = arith.constant dense<0.000000e+00> : vector<2x32xf32>
    %2 = tpu.matmul %0, %1, %cst {dimension_numbers = #tpu.dot_dimension_numbers<[1], [0], [0], [1], [0, 0, 1, 1], [], []>} : vector<2x32xbf16>, vector<32x32xbf16>, vector<2x32xf32> -> vector<2x32xf32>
    %c0_3 = arith.constant 0 : index
    %c0_4 = arith.constant 0 : index
    %3 = vector.load %arg2[%c0_3, %c0_4] : memref<1x32xf32, #tpu.memory_space<vmem>>, vector<1x32xf32>
    %4 = vector.broadcast %3 : vector<1x32xf32> to vector<2x32xf32>
    %5 = arith.addf %2, %4 : vector<2x32xf32>
    %6 = math.tanh %5 : vector<2x32xf32>
    %7 = arith.truncf %6 : vector<2x32xf32> to vector<2x32xbf16>
    %c0_5 = arith.constant 0 : index
    %c0_6 = arith.constant 0 : index
    %8 = vector.load %arg3[%c0_5, %c0_6] : memref<32x128xbf16, #tpu.memory_space<vmem>>, vector<32x128xbf16>
    %cst_7 = arith.constant dense<0.000000e+00> : vector<2x128xf32>
    %9 = tpu.matmul %7, %8, %cst_7 {dimension_numbers = #tpu.dot_dimension_numbers<[1], [0], [0], [1], [0, 0, 1, 1], [], []>} : vector<2x32xbf16>, vector<32x128xbf16>, vector<2x128xf32> -> vector<2x128xf32>
    %c0_8 = arith.constant 0 : index
    %c0_9 = arith.constant 0 : index
    %10 = vector.load %arg4[%c0_8, %c0_9] : memref<1x128xf32, #tpu.memory_space<vmem>>, vector<1x128xf32>
    %11 = vector.broadcast %10 : vector<1x128xf32> to vector<2x128xf32>
    %12 = arith.addf %9, %11 : vector<2x128xf32>
    %c0_10 = arith.constant 0 : index
    %c0_11 = arith.constant 0 : index
    %13 = vector.load %arg5[%c0_10, %c0_11] : memref<2x128xf32, #tpu.memory_space<vmem>>, vector<2x128xf32>
    tpu.vector_store %arg5[%c0_10, %c0_11], %12 {strides = array<i32>} : memref<2x128xf32, #tpu.memory_space<vmem>>, vector<2x128xf32>,
    return
  }
}

module attributes {stable_mosaic.version = 11 : i64} {
  func.func @_ffn_kernel(%arg0: i32, %arg1: memref<16x32xbf16, #tpu.memory_space<vmem>>, %arg2: memref<32x64xbf16, #tpu.memory_space<vmem>>, %arg3: memref<1x64xf32, #tpu.memory_space<vmem>>, %arg4: memref<64x32xbf16, #tpu.memory_space<vmem>>, %arg5: memref<1x32xf32, #tpu.memory_space<vmem>>, %arg6: memref<1x32xf32, #tpu.memory_space<vmem>>, %arg7: memref<1x32xf32, #tpu.memory_space<vmem>>, %arg8: memref<16x32xbf16, #tpu.memory_space<vmem>>) attributes {dimension_semantics = [#tpu.dimension_semantics<parallel>], iteration_bounds = array<i64: 1>, scalar_prefetch = 0 : i64, scratch_operands = 0 : i64, tpu.core_type = #tpu.core_type<tc>, window_params = [{transform_indices = @transform_0, window_bounds = array<i64: 16, 32>}, {pipeline_mode = #tpu.pipeline_mode<synchronous>, transform_indices = @transform_1, window_bounds = array<i64: 32, 64>}, {pipeline_mode = #tpu.pipeline_mode<synchronous>, transform_indices = @transform_2, window_bounds = array<i64: 1, 64>}, {pipeline_mode = #tpu.pipeline_mode<synchronous>, transform_indices = @transform_3, window_bounds = array<i64: 64, 32>}, {pipeline_mode = #tpu.pipeline_mode<synchronous>, transform_indices = @transform_4, window_bounds = array<i64: 1, 32>}, {pipeline_mode = #tpu.pipeline_mode<synchronous>, transform_indices = @transform_5, window_bounds = array<i64: 1, 32>}, {pipeline_mode = #tpu.pipeline_mode<synchronous>, transform_indices = @transform_6, window_bounds = array<i64: 1, 32>}, {transform_indices = @transform_7, window_bounds = array<i64: 16, 32>}]} {
    %c0 = arith.constant 0 : index
    %c0_0 = arith.constant 0 : index
    %0 = vector.load %arg1[%c0, %c0_0] : memref<16x32xbf16, #tpu.memory_space<vmem>>, vector<16x32xbf16>
    %c0_1 = arith.constant 0 : index
    %c0_2 = arith.constant 0 : index
    %1 = vector.load %arg2[%c0_1, %c0_2] : memref<32x64xbf16, #tpu.memory_space<vmem>>, vector<32x64xbf16>
    %cst = arith.constant dense<0.000000e+00> : vector<16x64xf32>
    %2 = tpu.matmul %0, %1, %cst {dimension_numbers = #tpu.dot_dimension_numbers<[1], [0], [0], [1], [0, 0, 1, 1], [], []>} : vector<16x32xbf16>, vector<32x64xbf16>, vector<16x64xf32> -> vector<16x64xf32>
    %c0_3 = arith.constant 0 : index
    %c0_4 = arith.constant 0 : index
    %3 = vector.load %arg3[%c0_3, %c0_4] : memref<1x64xf32, #tpu.memory_space<vmem>>, vector<1x64xf32>
    %4 = vector.broadcast %3 : vector<1x64xf32> to vector<16x64xf32>
    %5 = arith.addf %2, %4 : vector<16x64xf32>
    %6 = arith.mulf %5, %5 : vector<16x64xf32>
    %7 = arith.mulf %5, %6 : vector<16x64xf32>
    %cst_5 = arith.constant 4.471500e-02 : f32
    %8 = vector.broadcast %cst_5 : f32 to vector<16x64xf32>
    %9 = arith.mulf %8, %7 : vector<16x64xf32>
    %10 = arith.addf %5, %9 : vector<16x64xf32>
    %cst_6 = arith.constant 0.797884583 : f32
    %11 = vector.broadcast %cst_6 : f32 to vector<16x64xf32>
    %12 = arith.mulf %11, %10 : vector<16x64xf32>
    %13 = math.tanh %12 : vector<16x64xf32>
    %cst_7 = arith.constant 1.000000e+00 : f32
    %14 = vector.broadcast %cst_7 : f32 to vector<16x64xf32>
    %15 = arith.addf %14, %13 : vector<16x64xf32>
    %cst_8 = arith.constant 5.000000e-01 : f32
    %16 = vector.broadcast %cst_8 : f32 to vector<16x64xf32>
    %17 = arith.mulf %16, %15 : vector<16x64xf32>
    %18 = arith.mulf %5, %17 : vector<16x64xf32>
    %19 = arith.truncf %18 : vector<16x64xf32> to vector<16x64xbf16>
    %c0_9 = arith.constant 0 : index
    %c0_10 = arith.constant 0 : index
    %20 = vector.load %arg4[%c0_9, %c0_10] : memref<64x32xbf16, #tpu.memory_space<vmem>>, vector<64x32xbf16>
    %cst_11 = arith.constant dense<0.000000e+00> : vector<16x32xf32>
    %21 = tpu.matmul %19, %20, %cst_11 {dimension_numbers = #tpu.dot_dimension_numbers<[1], [0], [0], [1], [0, 0, 1, 1], [], []>} : vector<16x64xbf16>, vector<64x32xbf16>, vector<16x32xf32> -> vector<16x32xf32>
    %c0_12 = arith.constant 0 : index
    %c0_13 = arith.constant 0 : index
    %22 = vector.load %arg5[%c0_12, %c0_13] : memref<1x32xf32, #tpu.memory_space<vmem>>, vector<1x32xf32>
    %23 = vector.broadcast %22 : vector<1x32xf32> to vector<16x32xf32>
    %24 = arith.addf %21, %23 : vector<16x32xf32>
    %25 = arith.extf %0 : vector<16x32xbf16> to vector<16x32xf32>
    %26 = arith.addf %24, %25 : vector<16x32xf32>
    %cst_14 = arith.constant dense<0.000000e+00> : vector<16xf32>
    %27 = vector.multi_reduction <add>, %26, %cst_14 [1] : vector<16x32xf32> to vector<16xf32>
    %28 = vector.shape_cast %27 : vector<16xf32> to vector<16x1xf32>
    %cst_15 = arith.constant 3.200000e+01 : f32
    %29 = vector.broadcast %cst_15 : f32 to vector<16x1xf32>
    %30 = arith.divf %28, %29 : vector<16x1xf32>
    %31 = vector.broadcast %30 : vector<16x1xf32> to vector<16x32xf32>
    %32 = arith.subf %26, %31 : vector<16x32xf32>
    %33 = vector.broadcast %30 : vector<16x1xf32> to vector<16x32xf32>
    %34 = arith.subf %26, %33 : vector<16x32xf32>
    %35 = arith.mulf %32, %34 : vector<16x32xf32>
    %cst_16 = arith.constant dense<0.000000e+00> : vector<16xf32>
    %36 = vector.multi_reduction <add>, %35, %cst_16 [1] : vector<16x32xf32> to vector<16xf32>
    %37 = vector.shape_cast %36 : vector<16xf32> to vector<16x1xf32>
    %cst_17 = arith.constant 3.200000e+01 : f32
    %38 = vector.broadcast %cst_17 : f32 to vector<16x1xf32>
    %39 = arith.divf %37, %38 : vector<16x1xf32>
    %40 = vector.broadcast %30 : vector<16x1xf32> to vector<16x32xf32>
    %41 = arith.subf %26, %40 : vector<16x32xf32>
    %cst_18 = arith.constant 9.99999974E-6 : f32
    %42 = vector.broadcast %cst_18 : f32 to vector<16x1xf32>
    %43 = arith.addf %39, %42 : vector<16x1xf32>
    %44 = math.rsqrt %43 : vector<16x1xf32>
    %45 = vector.broadcast %44 : vector<16x1xf32> to vector<16x32xf32>
    %46 = arith.mulf %41, %45 : vector<16x32xf32>
    %c0_19 = arith.constant 0 : index
    %c0_20 = arith.constant 0 : index
    %47 = vector.load %arg6[%c0_19, %c0_20] : memref<1x32xf32, #tpu.memory_space<vmem>>, vector<1x32xf32>
    %48 = vector.broadcast %47 : vector<1x32xf32> to vector<16x32xf32>
    %49 = arith.mulf %46, %48 : vector<16x32xf32>
    %c0_21 = arith.constant 0 : index
    %c0_22 = arith.constant 0 : index
    %50 = vector.load %arg7[%c0_21, %c0_22] : memref<1x32xf32, #tpu.memory_space<vmem>>, vector<1x32xf32>
    %51 = vector.broadcast %50 : vector<1x32xf32> to vector<16x32xf32>
    %52 = arith.addf %49, %51 : vector<16x32xf32>
    %53 = arith.truncf %52 : vector<16x32xf32> to vector<16x32xbf16>
    %c0_23 = arith.constant 0 : index
    %c0_24 = arith.constant 0 : index
    %54 = vector.load %arg8[%c0_23, %c0_24] : memref<16x32xbf16, #tpu.memory_space<vmem>>, vector<16x32xbf16>
    tpu.vector_store %arg8[%c0_23, %c0_24], %53 {strides = array<i32>} : memref<16x32xbf16, #tpu.memory_space<vmem>>, vector<16x32xbf16>,
    return
  }
  func.func @transform_0(%arg0: i32) -> (i32, i32) {
    %c0_i32 = arith.constant 0 : i32
    %c0_i32_0 = arith.constant 0 : i32
    return %arg0, %c0_i32 : i32, i32
  }
  func.func @transform_1(%arg0: i32) -> (i32, i32) {
    %c0_i32 = arith.constant 0 : i32
    %c0_i32_0 = arith.constant 0 : i32
    %c0_i32_1 = arith.constant 0 : i32
    return %c0_i32, %c0_i32_0 : i32, i32
  }
  func.func @transform_2(%arg0: i32) -> (i32, i32) {
    %c0_i32 = arith.constant 0 : i32
    %c0_i32_0 = arith.constant 0 : i32
    %c0_i32_1 = arith.constant 0 : i32
    return %c0_i32, %c0_i32_0 : i32, i32
  }
  func.func @transform_3(%arg0: i32) -> (i32, i32) {
    %c0_i32 = arith.constant 0 : i32
    %c0_i32_0 = arith.constant 0 : i32
    %c0_i32_1 = arith.constant 0 : i32
    return %c0_i32, %c0_i32_0 : i32, i32
  }
  func.func @transform_4(%arg0: i32) -> (i32, i32) {
    %c0_i32 = arith.constant 0 : i32
    %c0_i32_0 = arith.constant 0 : i32
    %c0_i32_1 = arith.constant 0 : i32
    return %c0_i32, %c0_i32_0 : i32, i32
  }
  func.func @transform_5(%arg0: i32) -> (i32, i32) {
    %c0_i32 = arith.constant 0 : i32
    %c0_i32_0 = arith.constant 0 : i32
    %c0_i32_1 = arith.constant 0 : i32
    return %c0_i32, %c0_i32_0 : i32, i32
  }
  func.func @transform_6(%arg0: i32) -> (i32, i32) {
    %c0_i32 = arith.constant 0 : i32
    %c0_i32_0 = arith.constant 0 : i32
    %c0_i32_1 = arith.constant 0 : i32
    return %c0_i32, %c0_i32_0 : i32, i32
  }
  func.func @transform_7(%arg0: i32) -> (i32, i32) {
    %c0_i32 = arith.constant 0 : i32
    %c0_i32_0 = arith.constant 0 : i32
    return %arg0, %c0_i32 : i32, i32
  }
}

</mosaic_0001>

<llo_original>
// kernel: roberta_classifier_forward.10
$region0: #{roberta_classifier_forward.10}
  #allocation0 [shape = 'u32[]', space=smem, size = 0x4, offset = 0x4, fixed_abs, tag = 'smem constant byte address 0x4 - core index']
  #allocation1 [shape = 'u32[144,128]{1,0:T(1,128)}', space=vmem, size = 0x12000, scoped, tag = 'internal scratch']
  %s0 = inlined_call_operand.vmem [shape: bf16[16,32], index: 0, kind: input, shape index: {}]
  %s1 = inlined_call_operand.vmem [shape: f32[1,32], index: 1, kind: input, shape index: {}]
  %s2 = inlined_call_operand.vmem [shape: f32[1,32], index: 2, kind: input, shape index: {}]
  %s3 = inlined_call_operand.vmem [shape: bf16[16,32], index: 3, kind: output, shape index: {}]
  %s4 = sld [smem:[#allocation0]]
  $region22: #{roberta_classifier_forward.10} parent=0
    _
  %s6 = ssub.s32 1, %s4
  %s7 = scalar_select 0, %s6, %s4
  // Predicated region
  $region2: #{roberta_classifier_forward.10} parent=0 // pred_check
    _
  $region3: #{roberta_classifier_forward.10} parent=0 // pred_check_branch
    %9 = sbr.rel (0) target = $region5
  $region4: #{roberta_classifier_forward.10} parent=0 // pred_region
    _
  $region5: #{roberta_classifier_forward.10} parent=0 // pred_fallthru
    _
  // Predicated region
  $region6: #{roberta_classifier_forward.10} parent=0 // pred_check
    _
  $region7: #{roberta_classifier_forward.10} parent=0 // pred_check_branch
    %11 = sbr.rel (0) target = $region9
  $region8: #{roberta_classifier_forward.10} parent=0 // pred_region
    _
  $region9: #{roberta_classifier_forward.10} parent=0 // pred_fallthru
    _
  // Predicated region
  $region10: #{roberta_classifier_forward.10} parent=0 // pred_check
    _
  $region11: #{roberta_classifier_forward.10} parent=0 // pred_check_branch
    %13 = sbr.rel (0) target = $region13
  $region12: #{roberta_classifier_forward.10} parent=0 // pred_region
    _
  $region13: #{roberta_classifier_forward.10} parent=0 // pred_fallthru
    _
  %v14 = vld [vmem:[%s0] sm:$0xf]
  %v15 = vld [vmem:[%s0 + $0x4] sm:$0xf]
  %v16 = vunpack.c.l.bf16 %v14
  %v17 = vunpack.c.l.bf16 %v15
  %vm18 = vcmask 261120
  %v19 = vsel %vm18, %v16, 0.0
  %20 = vadd.xlane.f32.xlu0 %v19
  %v21 = vpop.xlane.xlu0 %20
  %v22 = vsel %vm18, %v17, 0.0
  %23 = vadd.xlane.f32.xlu0 %v22
  %v24 = vpop.xlane.xlu0 %23
  %v25 = vrcp.pop 32.0
  %v26 = vmul.f32 %v21, %v25
  %v27 = vmul.f32 %v24, %v25
  %v28 = vsub.f32 %v16, %v26
  %v29 = vsub.f32 %v17, %v27
  %v30 = vmul.f32 %v28, %v28
  %v31 = vmul.f32 %v29, %v29
  %v32 = vsel %vm18, %v30, 0.0
  %33 = vadd.xlane.f32.xlu0 %v32
  %v34 = vpop.xlane.xlu0 %33
  %v35 = vsel %vm18, %v31, 0.0
  %36 = vadd.xlane.f32.xlu0 %v35
  %v37 = vpop.xlane.xlu0 %36
  %v38 = vmul.f32 %v34, %v25
  %v39 = vmul.f32 %v37, %v25
  %v40 = vadd.f32 %v38, 1e-05
  %v41 = vadd.f32 %v39, 1e-05
  %v42 = vrsqrt.pop %v40
  %v43 = vrsqrt.pop %v41
  %v44 = vmul.f32 %v28, %v42
  %v45 = vmul.f32 %v29, %v43
  %v46 = vld [vmem:[%s1] sm:$0x1]
  %v48 = vlaneseq
  %v49 = vshrl.u32 %v48, 7
  %v50 = vsub.s32 0, %v49
  %v51 = vrot.slane %v46, %v50
  %v53 = vmul.f32 %v44, %v51
  %v54 = vmul.f32 %v45, %v51
  %v55 = vld [vmem:[%s2] sm:$0x1]
  %v57 = vlaneseq
  %v58 = vshrl.u32 %v57, 7
  %v59 = vsub.s32 0, %v58
  %v60 = vrot.slane %v55, %v59
  %v62 = vadd.f32 %v53, %v60
  %v63 = vadd.f32 %v54, %v60
  %v64 = vpack.c.bf16 %v63, %v62
  %v66 = vunpack.c.l.b16 %v64
  %v67 = vunpack.c.h.b16 %v64
  %v68 = vpack.c.b16 %v66, %v66
  %v69 = vpack.c.b16 %v67, %v67
  %vm72 = vcmask 257024
  %73 = vst.msk [vmem:[%s3] sm:$0xf] %vm72, %v68
  %74 = vst.msk [vmem:[%s3 + $0x4] sm:$0xf] %vm72, %v69
  // Predicated region
  $region14: #{roberta_classifier_forward.10} parent=0 // pred_check
    _
  $region15: #{roberta_classifier_forward.10} parent=0 // pred_check_branch
    %76 = sbr.rel (0) target = $region17
  $region16: #{roberta_classifier_forward.10} parent=0 // pred_region
    _
  $region17: #{roberta_classifier_forward.10} parent=0 // pred_fallthru
    _
  // Predicated region
  $region18: #{roberta_classifier_forward.10} parent=0 // pred_check
    _
  $region19: #{roberta_classifier_forward.10} parent=0 // pred_check_branch
    %78 = sbr.rel (0) target = $region21
  $region20: #{roberta_classifier_forward.10} parent=0 // pred_region
    _
  $region21: #{roberta_classifier_forward.10} parent=0 // pred_fallthru
    _

// kernel: roberta_classifier_forward.11
$region0: #{roberta_classifier_forward.11}
  #allocation0 [shape = 'u32[]', space=smem, size = 0x4, offset = 0x4, fixed_abs, tag = 'smem constant byte address 0x4 - core index']
  #allocation1 [shape = 'u32[144,128]{1,0:T(1,128)}', space=vmem, size = 0x12000, scoped, tag = 'internal scratch']
  #allocation2 [shape = 'f32[16,96]{1,0:T(8,128)}', space=vmem, size = 0x2000, scoped, tag = 'scratch operand']
  %s0 = inlined_call_operand.vmem [shape: bf16[16,32], index: 0, kind: input, shape index: {}]
  %s1 = inlined_call_operand.vmem [shape: bf16[32,96], index: 1, kind: input, shape index: {}]
  %s2 = inlined_call_operand.vmem [shape: f32[1,96], index: 2, kind: input, shape index: {}]
  %s3 = inlined_call_operand.vmem [shape: bf16[16,96], index: 3, kind: output, shape index: {}]
  %s4 = sld [smem:[#allocation0]]
  $region30: #{roberta_classifier_forward.11} parent=0
    _
  %s6 = ssub.s32 1, %s4
  %s7 = scalar_select 0, %s6, %s4
  // Predicated region
  $region2: #{roberta_classifier_forward.11} parent=0 // pred_check
    _
  $region3: #{roberta_classifier_forward.11} parent=0 // pred_check_branch
    %9 = sbr.rel (0) target = $region5
  $region4: #{roberta_classifier_forward.11} parent=0 // pred_region
    _
  $region5: #{roberta_classifier_forward.11} parent=0 // pred_fallthru
    _
  // Predicated region
  $region6: #{roberta_classifier_forward.11} parent=0 // pred_check
    _
  $region7: #{roberta_classifier_forward.11} parent=0 // pred_check_branch
    %11 = sbr.rel (0) target = $region9
  $region8: #{roberta_classifier_forward.11} parent=0 // pred_region
    _
  $region9: #{roberta_classifier_forward.11} parent=0 // pred_fallthru
    _
  // Predicated region
  $region10: #{roberta_classifier_forward.11} parent=0 // pred_check
    _
  $region11: #{roberta_classifier_forward.11} parent=0 // pred_check_branch
    %13 = sbr.rel (0) target = $region13
  $region12: #{roberta_classifier_forward.11} parent=0 // pred_region
    _
  $region13: #{roberta_classifier_forward.11} parent=0 // pred_fallthru
    _
  %p15 = scmp.eq.s32.totalorder 0, 0
  // Predicated region
  $region14: #{roberta_classifier_forward.11} parent=0 // pred_check
    %p16 = pneg %p15
  $region15: #{roberta_classifier_forward.11} parent=0 // pred_check_branch
    %18 = sbr.rel (%p16) target = $region17
  $region16: #{roberta_classifier_forward.11} parent=0 // pred_region
    %vm19 = vcmask 785408
    %20 = vst.msk [vmem:[#allocation2] sm:$0xff] %vm19, 0.0
    %21 = vst.msk [vmem:[#allocation2 + $0x8] sm:$0xff] %vm19, 0.0
  $region17: #{roberta_classifier_forward.11} parent=0 // pred_fallthru
    _
  %v22 = vld [vmem:[#allocation2] sm:$0xff]
  %v23 = vld [vmem:[#allocation2 + $0x8] sm:$0xff]
  %v24 = vld [vmem:[%s0] sm:$0xf]
  %v25 = vld [vmem:[%s0 + $0x4] sm:$0xf]
  %v26 = vld [vmem:[%s1] sm:$0xf]
  %v27 = vld [vmem:[%s1 + $0x4] sm:$0xf]
  %v28 = vld [vmem:[%s1 + $0x8] sm:$0xf]
  %v29 = vld [vmem:[%s1 + $0xc] sm:$0xf]
  %v32 = vunpack.c.l.b16 %v24
  %v33 = vunpack.c.l.b16 %v25
  %v34 = vpack.c.b16 %v33, %v32
  %v39 = vunpack.c.l.b16 %v26
  %v40 = vunpack.c.l.b16 %v27
  %v41 = vunpack.c.l.b16 %v28
  %v42 = vunpack.c.l.b16 %v29
  %v43 = vpack.c.b16 %v40, %v39
  %v44 = vpack.c.b16 %v42, %v41
  %vm47 = vcmask 261120
  %v49 = vsel %vm47, %v34, 0
  %51 = vmatprep.subr.bf16.mxu0 0
  %52 = vmatpush1.bf16.msra.mxu0 %v43
  %53 = vmatprep.subr.bf16.mxu0 0
  %54 = vmatpush1.bf16.msra.mxu0 %v44
  %55 = vmatprep.subr.bf16.mxu0 0
  %56 = vmatpush1.bf16.msra.mxu0 0
  %57 = vmatprep.subr.bf16.mxu0 0
  %58 = vmatpush1.bf16.msra.mxu0 0
  %59 = vmatprep.subr.bf16.mxu0 0
  %60 = vmatpush1.bf16.msra.mxu0 0
  %61 = vmatprep.subr.bf16.mxu0 0
  %62 = vmatpush1.bf16.msra.mxu0 0
  %63 = vmatprep.subr.bf16.mxu0 0
  %64 = vmatpush1.bf16.msra.mxu0 0
  %65 = vmatprep.subr.bf16.mxu0 0
  %66 = vmatpush1.bf16.msra.mxu0 0
  %67 = vmatprep.subr.bf16.mxu0 0
  %68 = vmatpush1.bf16.msra.mxu0 0
  %69 = vmatprep.subr.bf16.mxu0 0
  %70 = vmatpush1.bf16.msra.mxu0 0
  %71 = vmatprep.subr.bf16.mxu0 0
  %72 = vmatpush1.bf16.msra.mxu0 0
  %73 = vmatprep.subr.bf16.mxu0 0
  %74 = vmatpush1.bf16.msra.mxu0 0
  %75 = vmatprep.subr.bf16.mxu0 0
  %76 = vmatpush1.bf16.msra.mxu0 0
  %77 = vmatprep.subr.bf16.mxu0 0
  %78 = vmatpush1.bf16.msra.mxu0 0
  %79 = vmatprep.subr.bf16.mxu0 0
  %80 = vmatpush1.bf16.msra.mxu0 0
  %81 = vmatprep.subr.bf16.mxu0 0
  %82 = vmatpush1.bf16.msra.mxu0 0
  %83 = vmatprep.mubr.bf16.mxu0 0
  %84 = vmatmul.mubr.bf16.gmra.mrb[0].mxu0 %v49
  %v85 = vpop.f32.mrb[0].mxu0
  %v86 = vadd.f32 0.0, %v85
  %v87 = vpop.f32.mrb[0].mxu0
  %v88 = vpop.f32.mrb[0].mxu0
  %v89 = vadd.f32 0.0, %v88
  %v90 = vpop.f32.mrb[0].mxu0
  %91 = vdwg.mxu0
  %v92 = vadd.f32 %v22, %v86
  %v93 = vadd.f32 %v23, %v89
  %vm94 = vcmask 785408
  %95 = vst.msk [vmem:[#allocation2] sm:$0xff] %vm94, %v92
  %96 = vst.msk [vmem:[#allocation2 + $0x8] sm:$0xff] %vm94, %v93
  // Predicated region
  $region18: #{roberta_classifier_forward.11} parent=0 // pred_check
    %p97 = pneg %p15
  $region19: #{roberta_classifier_forward.11} parent=0 // pred_check_branch
    %99 = sbr.rel (%p97) target = $region21
  $region20: #{roberta_classifier_forward.11} parent=0 // pred_region
    %v100 = vld [vmem:[#allocation2] sm:$0xff]
    %v101 = vld [vmem:[#allocation2 + $0x8] sm:$0xff]
    %v102 = vld [vmem:[%s2] sm:$0x1]
    %v104 = vlaneseq
    %v105 = vshrl.u32 %v104, 7
    %v106 = vsub.s32 0, %v105
    %v107 = vrot.slane %v102, %v106
    %v109 = vadd.f32 %v100, %v107
    %v110 = vadd.f32 %v101, %v107
    %v111 = vpack.c.bf16 %v110, %v109
    %v113 = vunpack.c.l.b16 %v111
    %v114 = vunpack.c.h.b16 %v111
    %v115 = vpack.c.b16 %v113, %v113
    %v116 = vpack.c.b16 %v114, %v114
    %vm119 = vcmask 781312
    %120 = vst.msk [vmem:[%s3] sm:$0xf] %vm119, %v115
    %121 = vst.msk [vmem:[%s3 + $0x4] sm:$0xf] %vm119, %v116
  $region21: #{roberta_classifier_forward.11} parent=0 // pred_fallthru
    _
  // Predicated region
  $region22: #{roberta_classifier_forward.11} parent=0 // pred_check
    _
  $region23: #{roberta_classifier_forward.11} parent=0 // pred_check_branch
    %123 = sbr.rel (0) target = $region25
  $region24: #{roberta_classifier_forward.11} parent=0 // pred_region
    _
  $region25: #{roberta_classifier_forward.11} parent=0 // pred_fallthru
    _
  // Predicated region
  $region26: #{roberta_classifier_forward.11} parent=0 // pred_check
    _
  $region27: #{roberta_classifier_forward.11} parent=0 // pred_check_branch
    %125 = sbr.rel (0) target = $region29
  $region28: #{roberta_classifier_forward.11} parent=0 // pred_region
    _
  $region29: #{roberta_classifier_forward.11} parent=0 // pred_fallthru
    _

// kernel: roberta_classifier_forward.12
$region0: #{roberta_classifier_forward.12}
  #allocation0 [shape = 'u32[]', space=smem, size = 0x4, offset = 0x4, fixed_abs, tag = 'smem constant byte address 0x4 - core index']
  #allocation1 [shape = 'u32[144,128]{1,0:T(1,128)}', space=vmem, size = 0x12000, scoped, tag = 'internal scratch']
  %s0 = inlined_call_operand.vmem [shape: bf16[2,8,96], index: 0, kind: input, shape index: {}]
  %s1 = inlined_call_operand.vmem [shape: f32[2,1,8], index: 1, kind: input, shape index: {}]
  %s2 = inlined_call_operand.vmem [shape: bf16[2,8,32], index: 2, kind: output, shape index: {}]
  %s3 = sld [smem:[#allocation0]]
  $region41: #{roberta_classifier_forward.12} parent=0
    _
  %s5 = ssub.s32 1, %s3
  %s6 = scalar_select 0, %s5, %s3
  loop: start=0, step=1, limit=4
  $region2: #{roberta_classifier_forward.12} parent=0 // loop_pre_header
    _
  $region3: #{roberta_classifier_forward.12} parent=0 // loop_header
    %s8 = sphi 0, %s12
    %p9 = scmp.ge.s32.totalorder %s8, 4
    %s18 = sphi 0, %s20
    %s21 = sphi 0, %s18
    %s22 = sphi 0, %s21
    %s38 = sphi 0, %s22
    %s44 = sphi 0, %s46
    %s47 = sphi 0, %s44
    %s48 = sphi 0, %s47
    %s64 = sphi 0, %s48
    %s70 = sphi 0, %s72
    %s73 = sphi 0, %s70
    %s74 = sphi 0, %s73
    %s90 = sphi 0, %s74
  $region4: #{roberta_classifier_forward.12} parent=0 // loop_header_branch
    %11 = sbr.rel (%p9) target = $region8
  $region5: #{roberta_classifier_forward.12} parent=0 // loop_body
    %s13 = ssub.s32 %s8, 1
    %s14 = ssub.s32 %s8, 2
    %s15 = sadd.s32 %s8, 1
    %s16 = ssub.s32 %s8, %s15
    %p17 = scmp.eq.s32.totalorder %s16, 0
    %s19 = sadd.s32 %s18, 1
    %s20 = scalar_select %p17, %s18, %s19
    %p23 = pneg %p17
    %p24 = scmp.eq.s32.totalorder %s8, 1
    %p25 = por %p23, %p24
    %p26 = scmp.ne.s32.totalorder %s18, %s21
    %p27 = scmp.eq.s32.totalorder %s8, 0
    %p28 = por %p26, %p27
    %p29 = scmp.ne.s32.totalorder %s18, %s21
    %p30 = scmp.eq.s32.totalorder %s13, 1
    %p31 = por %p29, %p30
    %p32 = scmp.ne.s32.totalorder %s21, %s22
    %p33 = scmp.eq.s32.totalorder %s13, 0
    %p34 = por %p32, %p33
    %p35 = scmp.ne.s32.totalorder %s21, %s22
    %p36 = scmp.eq.s32.totalorder %s14, 1
    %p37 = por %p35, %p36
    %p39 = scmp.ne.s32.totalorder %s22, %s38
    %p40 = scmp.eq.s32.totalorder %s14, 0
    %p41 = por %p39, %p40
    %s42 = ssub.s32 %s8, %s15
    %p43 = scmp.eq.s32.totalorder %s42, 0
    %s45 = sadd.s32 %s44, 1
    %s46 = scalar_select %p43, %s44, %s45
    %p49 = pneg %p43
    %p50 = scmp.eq.s32.totalorder %s8, 1
    %p51 = por %p49, %p50
    %p52 = scmp.ne.s32.totalorder %s44, %s47
    %p53 = scmp.eq.s32.totalorder %s8, 0
    %p54 = por %p52, %p53
    %p55 = scmp.ne.s32.totalorder %s44, %s47
    %p56 = scmp.eq.s32.totalorder %s13, 1
    %p57 = por %p55, %p56
    %p58 = scmp.ne.s32.totalorder %s47, %s48
    %p59 = scmp.eq.s32.totalorder %s13, 0
    %p60 = por %p58, %p59
    %p61 = scmp.ne.s32.totalorder %s47, %s48
    %p62 = scmp.eq.s32.totalorder %s14, 1
    %p63 = por %p61, %p62
    %p65 = scmp.ne.s32.totalorder %s48, %s64
    %p66 = scmp.eq.s32.totalorder %s14, 0
    %p67 = por %p65, %p66
    %s68 = ssub.s32 %s8, %s15
    %p69 = scmp.eq.s32.totalorder %s68, 0
    %s71 = sadd.s32 %s70, 1
    %s72 = scalar_select %p69, %s70, %s71
    %p75 = pneg %p69
    %p76 = scmp.eq.s32.totalorder %s8, 1
    %p77 = por %p75, %p76
    %p78 = scmp.ne.s32.totalorder %s70, %s73
    %p79 = scmp.eq.s32.totalorder %s8, 0
    %p80 = por %p78, %p79
    %p81 = scmp.ne.s32.totalorder %s70, %s73
    %p82 = scmp.eq.s32.totalorder %s13, 1
    %p83 = por %p81, %p82
    %p84 = scmp.ne.s32.totalorder %s73, %s74
    %p85 = scmp.eq.s32.totalorder %s13, 0
    %p86 = por %p84, %p85
    %p87 = scmp.ne.s32.totalorder %s73, %s74
    %p88 = scmp.eq.s32.totalorder %s14, 1
    %p89 = por %p87, %p88
    %p91 = scmp.ne.s32.totalorder %s74, %s90
    %p92 = scmp.eq.s32.totalorder %s14, 0
    %p93 = por %p91, %p92
    %p94 = scmp.le.s32.totalorder 1, %s8
    %p95 = scmp.lt.s32.totalorder %s8, 3
    %p96 = pnand %p94, %p95
    %p97 = pneg %p96
    // Predicated region
    $region9: #{roberta_classifier_forward.12} parent=5 // pred_check
      _
    $region10: #{roberta_classifier_forward.12} parent=5 // pred_check_branch
      %99 = sbr.rel (%p96) target = $region12
    $region11: #{roberta_classifier_forward.12} parent=5 // pred_region
      %s100 = ssub.s32 %s8, 1
    $region12: #{roberta_classifier_forward.12} parent=5 // pred_fallthru
      _
    %p101 = scmp.lt.s32.totalorder %s8, 2
    // Predicated region
    $region13: #{roberta_classifier_forward.12} parent=5 // pred_check
      %p102 = pneg %p101
    $region14: #{roberta_classifier_forward.12} parent=5 // pred_check_branch
      %104 = sbr.rel (%p102) target = $region16
    $region15: #{roberta_classifier_forward.12} parent=5 // pred_region
      // Predicated region
      $region17: #{roberta_classifier_forward.12} parent=15 // pred_check
        %p105 = pneg %p28
      $region18: #{roberta_classifier_forward.12} parent=15 // pred_check_branch
        %107 = sbr.rel (%p105) target = $region20
      $region19: #{roberta_classifier_forward.12} parent=15 // pred_region
        %p108 = scmp.lt.s32.totalorder %s8, 1
        %s109 = scalar_select %p108, %s8, 1
        %s110 = smul.addr %s109, 4
        %s111 = scalar_lea.vmem %s0, %s110
      $region20: #{roberta_classifier_forward.12} parent=15 // pred_fallthru
        _
      // Predicated region
      $region21: #{roberta_classifier_forward.12} parent=15 // pred_check
        %p112 = pneg %p54
      $region22: #{roberta_classifier_forward.12} parent=15 // pred_check_branch
        %114 = sbr.rel (%p112) target = $region24
      $region23: #{roberta_classifier_forward.12} parent=15 // pred_region
        %p115 = scmp.lt.s32.totalorder %s8, 1
        %s116 = scalar_select %p115, %s8, 1
        %s117 = scalar_lea.vmem %s1, %s116
      $region24: #{roberta_classifier_forward.12} parent=15 // pred_fallthru
        _
    $region16: #{roberta_classifier_forward.12} parent=5 // pred_fallthru
      _
    %p118 = scmp.le.s32.totalorder 1, %s8
    %p119 = scmp.lt.s32.totalorder %s8, 3
    %p120 = pnand %p118, %p119
    %p121 = pneg %p120
    // Predicated region
    $region25: #{roberta_classifier_forward.12} parent=5 // pred_check
      _
    $region26: #{roberta_classifier_forward.12} parent=5 // pred_check_branch
      %123 = sbr.rel (%p120) target = $region28
    $region27: #{roberta_classifier_forward.12} parent=5 // pred_region
      %s124 = ssub.s32 %s8, 1
      %p125 = scmp.lt.s32.totalorder %s13, 1
      %s126 = scalar_select %p125, %s13, 1
      %s127 = smul.addr %s126, 4
      %s128 = scalar_lea.vmem %s0, %s127
      %p129 = pneg %p34
      %p130 = pneg %p31
      %p131 = scmp.lt.s32.totalorder %s13, 1
      %s132 = scalar_select %p131, %s13, 1
      %s133 = scalar_lea.vmem %s1, %s132
      %p134 = pneg %p60
      %p135 = pneg %p57
      %p136 = pneg %p86
      %p137 = pneg %p83
      %p138 = scmp.lt.s32.totalorder %s13, 1
      %s139 = scalar_select %p138, %s13, 1
      %s140 = smul.addr %s139, 4
      %s141 = scalar_lea.vmem %s2, %s140
      %p142 = scmp.lt.s32.totalorder %s13, 1
      %s143 = scalar_select %p142, %s13, 1
      %s144 = smul.addr %s143, 4
      %s145 = scalar_lea.vmem %s0, %s144
      %p146 = scmp.lt.s32.totalorder %s13, 1
      %s147 = scalar_select %p146, %s13, 1
      %s148 = scalar_lea.vmem %s1, %s147
      %p149 = scmp.lt.s32.totalorder %s13, 1
      %s150 = scalar_select %p149, %s13, 1
      %s151 = smul.addr %s150, 4
      %s152 = scalar_lea.vmem %s2, %s151
      %v154 = vld [vmem:[%s145] sm:$0xf]
      %v155 = vld [vmem:[%s148] sm:$0x1]
      %v156 = vsub.f32 1.0, %v155
      %v157 = vmul.f32 %v156, -1e+09
      %v159 = vunpack.c.l.b16 %v154
      %v160 = vpack.c.b16 %v159, %v159
      %161 = vrot.lane.b32.xlu0 %v160, 96
      %v162 = vpop.permute.xlu0 %161
      %vm163 = vcmask 130048
      %v165 = vsel %vm163, %v154, 0
      %v168 = vsel %vm163, %v162, 0
      %170 = vmatprep.subr.bf16.mxu0 0
      %171 = vmatpush1.bf16.xpose.msra.mxu0 %v168
      %172 = vmatprep.subr.bf16.mxu0 0
      %173 = vmatpush1.bf16.xpose.msra.mxu0 0
      %174 = vmatprep.subr.bf16.mxu0 0
      %175 = vmatpush1.bf16.xpose.msra.mxu0 0
      %176 = vmatprep.subr.bf16.mxu0 0
      %177 = vmatpush1.bf16.xpose.msra.mxu0 0
      %178 = vmatprep.subr.bf16.mxu0 0
      %179 = vmatpush1.bf16.xpose.msra.mxu0 0
      %180 = vmatprep.subr.bf16.mxu0 0
      %181 = vmatpush1.bf16.xpose.msra.mxu0 0
      %182 = vmatprep.subr.bf16.mxu0 0
      %183 = vmatpush1.bf16.xpose.msra.mxu0 0
      %184 = vmatprep.subr.bf16.mxu0 0
      %185 = vmatpush1.bf16.xpose.msra.mxu0 0
      %186 = vmatprep.subr.bf16.mxu0 0
      %187 = vmatpush1.bf16.xpose.msra.mxu0 0
      %188 = vmatprep.subr.bf16.mxu0 0
      %189 = vmatpush1.bf16.xpose.msra.mxu0 0
      %190 = vmatprep.subr.bf16.mxu0 0
      %191 = vmatpush1.bf16.xpose.msra.mxu0 0
      %192 = vmatprep.subr.bf16.mxu0 0
      %193 = vmatpush1.bf16.xpose.msra.mxu0 0
      %194 = vmatprep.subr.bf16.mxu0 0
      %195 = vmatpush1.bf16.xpose.msra.mxu0 0
      %196 = vmatprep.subr.bf16.mxu0 0
      %197 = vmatpush1.bf16.xpose.msra.mxu0 0
      %198 = vmatprep.subr.bf16.mxu0 0
      %199 = vmatpush1.bf16.xpose.msra.mxu0 0
      %200 = vmatprep.subr.bf16.mxu0 0
      %201 = vmatpush1.bf16.xpose.msra.mxu0 0
      %202 = vmatprep.mubr.bf16.mxu0 0
      %203 = vmatmul.mubr.bf16.gmra.mrb[0].mxu0 %v165
      %v204 = vpop.f32.mrb[0].mxu0
      %v205 = vadd.f32 0.0, %v204
      %v206 = vpop.f32.mrb[0].mxu0
      %v207 = vpop.f32.mrb[0].mxu0
      %v208 = vpop.f32.mrb[0].mxu0
      %209 = vdwg.mxu0
      %v210 = vmul.f32 %v205, 0.25
      %v212 = vlaneseq
      %v213 = vshrl.u32 %v212, 7
      %v214 = vsub.s32 0, %v213
      %v215 = vrot.slane %v157, %v214
      %v217 = vadd.f32 %v210, %v215
      %vm218 = vcmask 64512
      %v219 = vsel %vm218, %v217, -inf
      %220 = vmax.xlane.f32.xlu0 %v219
      %v221 = vpop.xlane.xlu0 %220
      %v222 = vsub.f32 %v217, %v221
      %v223 = vmul.f32 %v222, 1.442695
      %v224 = vpow.pop %v223
      %v225 = vsel %vm218, %v224, 0.0
      %226 = vadd.xlane.f32.xlu0 %v225
      %v227 = vpop.xlane.xlu0 %226
      %v228 = vrcp.pop %v227
      %v229 = vmul.f32 %v224, %v228
      %v230 = vpack.c.bf16 %v229, %v229
      %231 = vrot.lane.b32.xlu0 %v160, 64
      %v232 = vpop.permute.xlu0 %231
      %v234 = vsel %vm218, %v230, 0
      %vm236 = vcmask 1043456
      %v238 = vsel %vm236, %v232, 0
      %240 = vmatprep.subr.bf16.mxu0 0
      %241 = vmatpush1.bf16.msra.mxu0 %v238
      %242 = vmatprep.subr.bf16.mxu0 0
      %243 = vmatpush1.bf16.msra.mxu0 0
      %244 = vmatprep.subr.bf16.mxu0 0
      %245 = vmatpush1.bf16.msra.mxu0 0
      %246 = vmatprep.subr.bf16.mxu0 0
      %247 = vmatpush1.bf16.msra.mxu0 0
      %248 = vmatprep.subr.bf16.mxu0 0
      %249 = vmatpush1.bf16.msra.mxu0 0
      %250 = vmatprep.subr.bf16.mxu0 0
      %251 = vmatpush1.bf16.msra.mxu0 0
      %252 = vmatprep.subr.bf16.mxu0 0
      %253 = vmatpush1.bf16.msra.mxu0 0
      %254 = vmatprep.subr.bf16.mxu0 0
      %255 = vmatpush1.bf16.msra.mxu0 0
      %256 = vmatprep.subr.bf16.mxu0 0
      %257 = vmatpush1.bf16.msra.mxu0 0
      %258 = vmatprep.subr.bf16.mxu0 0
      %259 = vmatpush1.bf16.msra.mxu0 0
      %260 = vmatprep.subr.bf16.mxu0 0
      %261 = vmatpush1.bf16.msra.mxu0 0
      %262 = vmatprep.subr.bf16.mxu0 0
      %263 = vmatpush1.bf16.msra.mxu0 0
      %264 = vmatprep.subr.bf16.mxu0 0
      %265 = vmatpush1.bf16.msra.mxu0 0
      %266 = vmatprep.subr.bf16.mxu0 0
      %267 = vmatpush1.bf16.msra.mxu0 0
      %268 = vmatprep.subr.bf16.mxu0 0
      %269 = vmatpush1.bf16.msra.mxu0 0
      %270 = vmatprep.subr.bf16.mxu0 0
      %271 = vmatpush1.bf16.msra.mxu0 0
      %272 = vmatprep.mubr.bf16.mxu0 0
      %273 = vmatmul.mubr.bf16.gmra.mrb[0].mxu0 %v234
      %v274 = vpop.f32.mrb[0].mxu0
      %v275 = vadd.f32 0.0, %v274
      %v276 = vpop.f32.mrb[0].mxu0
      %v277 = vpop.f32.mrb[0].mxu0
      %v278 = vpop.f32.mrb[0].mxu0
      %279 = vdwg.mxu0
      %280 = vrot.lane.b32.xlu0 %v160, 112
      %v281 = vpop.permute.xlu0 %280
      %282 = vrot.lane.b32.xlu0 %v160, 80
      %v283 = vpop.permute.xlu0 %282
      %v285 = vsel %vm163, %v281, 0
      %v288 = vsel %vm163, %v283, 0
      %290 = vmatprep.subr.bf16.mxu0 0
      %291 = vmatpush1.bf16.xpose.msra.mxu0 %v288
      %292 = vmatprep.subr.bf16.mxu0 0
      %293 = vmatpush1.bf16.xpose.msra.mxu0 0
      %294 = vmatprep.subr.bf16.mxu0 0
      %295 = vmatpush1.bf16.xpose.msra.mxu0 0
      %296 = vmatprep.subr.bf16.mxu0 0
      %297 = vmatpush1.bf16.xpose.msra.mxu0 0
      %298 = vmatprep.subr.bf16.mxu0 0
      %299 = vmatpush1.bf16.xpose.msra.mxu0 0
      %300 = vmatprep.subr.bf16.mxu0 0
      %301 = vmatpush1.bf16.xpose.msra.mxu0 0
      %302 = vmatprep.subr.bf16.mxu0 0
      %303 = vmatpush1.bf16.xpose.msra.mxu0 0
      %304 = vmatprep.subr.bf16.mxu0 0
      %305 = vmatpush1.bf16.xpose.msra.mxu0 0
      %306 = vmatprep.subr.bf16.mxu0 0
      %307 = vmatpush1.bf16.xpose.msra.mxu0 0
      %308 = vmatprep.subr.bf16.mxu0 0
      %309 = vmatpush1.bf16.xpose.msra.mxu0 0
      %310 = vmatprep.subr.bf16.mxu0 0
      %311 = vmatpush1.bf16.xpose.msra.mxu0 0
      %312 = vmatprep.subr.bf16.mxu0 0
      %313 = vmatpush1.bf16.xpose.msra.mxu0 0
      %314 = vmatprep.subr.bf16.mxu0 0
      %315 = vmatpush1.bf16.xpose.msra.mxu0 0
      %316 = vmatprep.subr.bf16.mxu0 0
      %317 = vmatpush1.bf16.xpose.msra.mxu0 0
      %318 = vmatprep.subr.bf16.mxu0 0
      %319 = vmatpush1.bf16.xpose.msra.mxu0 0
      %320 = vmatprep.subr.bf16.mxu0 0
      %321 = vmatpush1.bf16.xpose.msra.mxu0 0
      %322 = vmatprep.mubr.bf16.mxu0 0
      %323 = vmatmul.mubr.bf16.gmra.mrb[0].mxu0 %v285
      %v324 = vpop.f32.mrb[0].mxu0
      %v325 = vadd.f32 0.0, %v324
      %v326 = vpop.f32.mrb[0].mxu0
      %v327 = vpop.f32.mrb[0].mxu0
      %v328 = vpop.f32.mrb[0].mxu0
      %329 = vdwg.mxu0
      %v330 = vmul.f32 %v325, 0.25
      %v331 = vadd.f32 %v330, %v215
      %v332 = vsel %vm218, %v331, -inf
      %333 = vmax.xlane.f32.xlu0 %v332
      %v334 = vpop.xlane.xlu0 %333
      %v335 = vsub.f32 %v331, %v334
      %v336 = vmul.f32 %v335, 1.442695
      %v337 = vpow.pop %v336
      %v338 = vsel %vm218, %v337, 0.0
      %339 = vadd.xlane.f32.xlu0 %v338
      %v340 = vpop.xlane.xlu0 %339
      %v341 = vrcp.pop %v340
      %v342 = vmul.f32 %v337, %v341
      %v343 = vpack.c.bf16 %v342, %v342
      %344 = vrot.lane.b32.xlu0 %v160, 48
      %v345 = vpop.permute.xlu0 %344
      %v347 = vsel %vm218, %v343, 0
      %v350 = vsel %vm236, %v345, 0
      %352 = vmatprep.subr.bf16.mxu0 0
      %353 = vmatpush1.bf16.msra.mxu0 %v350
      %354 = vmatprep.subr.bf16.mxu0 0
      %355 = vmatpush1.bf16.msra.mxu0 0
      %356 = vmatprep.subr.bf16.mxu0 0
      %357 = vmatpush1.bf16.msra.mxu0 0
      %358 = vmatprep.subr.bf16.mxu0 0
      %359 = vmatpush1.bf16.msra.mxu0 0
      %360 = vmatprep.subr.bf16.mxu0 0
      %361 = vmatpush1.bf16.msra.mxu0 0
      %362 = vmatprep.subr.bf16.mxu0 0
      %363 = vmatpush1.bf16.msra.mxu0 0
      %364 = vmatprep.subr.bf16.mxu0 0
      %365 = vmatpush1.bf16.msra.mxu0 0
      %366 = vmatprep.subr.bf16.mxu0 0
      %367 = vmatpush1.bf16.msra.mxu0 0
      %368 = vmatprep.subr.bf16.mxu0 0
      %369 = vmatpush1.bf16.msra.mxu0 0
      %370 = vmatprep.subr.bf16.mxu0 0
      %371 = vmatpush1.bf16.msra.mxu0 0
      %372 = vmatprep.subr.bf16.mxu0 0
      %373 = vmatpush1.bf16.msra.mxu0 0
      %374 = vmatprep.subr.bf16.mxu0 0
      %375 = vmatpush1.bf16.msra.mxu0 0
      %376 = vmatprep.subr.bf16.mxu0 0
      %377 = vmatpush1.bf16.msra.mxu0 0
      %378 = vmatprep.subr.bf16.mxu0 0
      %379 = vmatpush1.bf16.msra.mxu0 0
      %380 = vmatprep.subr.bf16.mxu0 0
      %381 = vmatpush1.bf16.msra.mxu0 0
      %382 = vmatprep.subr.bf16.mxu0 0
      %383 = vmatpush1.bf16.msra.mxu0 0
      %384 = vmatprep.mubr.bf16.mxu0 0
      %385 = vmatmul.mubr.bf16.gmra.mrb[0].mxu0 %v347
      %v386 = vpop.f32.mrb[0].mxu0
      %v387 = vadd.f32 0.0, %v386
      %v388 = vpop.f32.mrb[0].mxu0
      %v389 = vpop.f32.mrb[0].mxu0
      %v390 = vpop.f32.mrb[0].mxu0
      %391 = vdwg.mxu0
      %393 = vrot.lane.b32.xlu0 %v387, 16
      %v394 = vpop.permute.xlu0 %393
      %v396 = vsel %vm163, %v275, %v394
      %v397 = vpack.c.bf16 %v396, %v396
      %vm398 = vcmask 257024
      %399 = vst.msk [vmem:[%s152] sm:$0xf] %vm398, %v397
      %p400 = scmp.lt.s32.totalorder %s13, 1
      %s401 = scalar_select %p400, %s13, 1
      %s402 = smul.addr %s401, 4
      %s403 = scalar_lea.vmem %s2, %s402
      // Predicated region
      $region29: #{roberta_classifier_forward.12} parent=27 // pred_check
        %p404 = pneg %p83
      $region30: #{roberta_classifier_forward.12} parent=27 // pred_check_branch
        %406 = sbr.rel (%p404) target = $region32
      $region31: #{roberta_classifier_forward.12} parent=27 // pred_region
        _
      $region32: #{roberta_classifier_forward.12} parent=27 // pred_fallthru
        _
    $region28: #{roberta_classifier_forward.12} parent=5 // pred_fallthru
      _
    %p407 = scmp.le.s32.totalorder 2, %s8
    // Predicated region
    $region33: #{roberta_classifier_forward.12} parent=5 // pred_check
      %p408 = pneg %p407
    $region34: #{roberta_classifier_forward.12} parent=5 // pred_check_branch
      %410 = sbr.rel (%p408) target = $region36
    $region35: #{roberta_classifier_forward.12} parent=5 // pred_region
      %s411 = ssub.s32 %s8, 2
      // Predicated region
      $region37: #{roberta_classifier_forward.12} parent=35 // pred_check
        %p412 = pneg %p89
      $region38: #{roberta_classifier_forward.12} parent=35 // pred_check_branch
        %414 = sbr.rel (%p412) target = $region40
      $region39: #{roberta_classifier_forward.12} parent=35 // pred_region
        %p415 = scmp.lt.s32.totalorder %s14, 1
        %s416 = scalar_select %p415, %s14, 1
        %s417 = smul.addr %s416, 4
        %s418 = scalar_lea.vmem %s2, %s417
      $region40: #{roberta_classifier_forward.12} parent=35 // pred_fallthru
        _
    $region36: #{roberta_classifier_forward.12} parent=5 // pred_fallthru
      _
  $region6: #{roberta_classifier_forward.12} parent=0 // loop_footer
    %s12 = sadd.s32 1, %s8
  $region7: #{roberta_classifier_forward.12} parent=0 // loop_footer_branch
    %7 = sbr.rel target = $region3
  $region8: #{roberta_classifier_forward.12} parent=0 // loop_exit
    _

// kernel: roberta_classifier_forward.13
$region0: #{roberta_classifier_forward.13}
  #allocation0 [shape = 'u32[]', space=smem, size = 0x4, offset = 0x4, fixed_abs, tag = 'smem constant byte address 0x4 - core index']
  #allocation1 [shape = 'u32[144,128]{1,0:T(1,128)}', space=vmem, size = 0x12000, scoped, tag = 'internal scratch']
  #allocation2 [shape = 'f32[16,32]{1,0:T(8,128)}', space=vmem, size = 0x2000, scoped, tag = 'scratch operand']
  %s0 = inlined_call_operand.vmem [shape: bf16[16,32], index: 0, kind: input, shape index: {}]
  %s1 = inlined_call_operand.vmem [shape: bf16[32,32], index: 1, kind: input, shape index: {}]
  %s2 = inlined_call_operand.vmem [shape: f32[1,32], index: 2, kind: input, shape index: {}]
  %s3 = inlined_call_operand.vmem [shape: bf16[16,32], index: 3, kind: input, shape index: {}]
  %s4 = inlined_call_operand.vmem [shape: f32[1,32], index: 4, kind: input, shape index: {}]
  %s5 = inlined_call_operand.vmem [shape: f32[1,32], index: 5, kind: input, shape index: {}]
  %s6 = inlined_call_operand.vmem [shape: bf16[16,32], index: 6, kind: output, shape index: {}]
  %s7 = sld [smem:[#allocation0]]
  $region42: #{roberta_classifier_forward.13} parent=0
    _
  %s9 = ssub.s32 1, %s7
  %s10 = scalar_select 0, %s9, %s7
  // Predicated region
  $region2: #{roberta_classifier_forward.13} parent=0 // pred_check
    _
  $region3: #{roberta_classifier_forward.13} parent=0 // pred_check_branch
    %12 = sbr.rel (0) target = $region5
  $region4: #{roberta_classifier_forward.13} parent=0 // pred_region
    _
  $region5: #{roberta_classifier_forward.13} parent=0 // pred_fallthru
    _
  // Predicated region
  $region6: #{roberta_classifier_forward.13} parent=0 // pred_check
    _
  $region7: #{roberta_classifier_forward.13} parent=0 // pred_check_branch
    %14 = sbr.rel (0) target = $region9
  $region8: #{roberta_classifier_forward.13} parent=0 // pred_region
    _
  $region9: #{roberta_classifier_forward.13} parent=0 // pred_fallthru
    _
  // Predicated region
  $region10: #{roberta_classifier_forward.13} parent=0 // pred_check
    _
  $region11: #{roberta_classifier_forward.13} parent=0 // pred_check_branch
    %16 = sbr.rel (0) target = $region13
  $region12: #{roberta_classifier_forward.13} parent=0 // pred_region
    _
  $region13: #{roberta_classifier_forward.13} parent=0 // pred_fallthru
    _
  // Predicated region
  $region14: #{roberta_classifier_forward.13} parent=0 // pred_check
    _
  $region15: #{roberta_classifier_forward.13} parent=0 // pred_check_branch
    %18 = sbr.rel (0) target = $region17
  $region16: #{roberta_classifier_forward.13} parent=0 // pred_region
    _
  $region17: #{roberta_classifier_forward.13} parent=0 // pred_fallthru
    _
  // Predicated region
  $region18: #{roberta_classifier_forward.13} parent=0 // pred_check
    _
  $region19: #{roberta_classifier_forward.13} parent=0 // pred_check_branch
    %20 = sbr.rel (0) target = $region21
  $region20: #{roberta_classifier_forward.13} parent=0 // pred_region
    _
  $region21: #{roberta_classifier_forward.13} parent=0 // pred_fallthru
    _
  // Predicated region
  $region22: #{roberta_classifier_forward.13} parent=0 // pred_check
    _
  $region23: #{roberta_classifier_forward.13} parent=0 // pred_check_branch
    %22 = sbr.rel (0) target = $region25
  $region24: #{roberta_classifier_forward.13} parent=0 // pred_region
    _
  $region25: #{roberta_classifier_forward.13} parent=0 // pred_fallthru
    _
  %p24 = scmp.eq.s32.totalorder 0, 0
  // Predicated region
  $region26: #{roberta_classifier_forward.13} parent=0 // pred_check
    %p25 = pneg %p24
  $region27: #{roberta_classifier_forward.13} parent=0 // pred_check_branch
    %27 = sbr.rel (%p25) target = $region29
  $region28: #{roberta_classifier_forward.13} parent=0 // pred_region
    %vm28 = vcmask 261120
    %29 = vst.msk [vmem:[#allocation2] sm:$0xff] %vm28, 0.0
    %30 = vst.msk [vmem:[#allocation2 + $0x8] sm:$0xff] %vm28, 0.0
  $region29: #{roberta_classifier_forward.13} parent=0 // pred_fallthru
    _
  %v31 = vld [vmem:[#allocation2] sm:$0xff]
  %v32 = vld [vmem:[#allocation2 + $0x8] sm:$0xff]
  %v33 = vld [vmem:[%s0] sm:$0xf]
  %v34 = vld [vmem:[%s0 + $0x4] sm:$0xf]
  %v35 = vld [vmem:[%s1] sm:$0xf]
  %v36 = vld [vmem:[%s1 + $0x4] sm:$0xf]
  %v37 = vld [vmem:[%s1 + $0x8] sm:$0xf]
  %v38 = vld [vmem:[%s1 + $0xc] sm:$0xf]
  %v41 = vunpack.c.l.b16 %v33
  %v42 = vunpack.c.l.b16 %v34
  %v43 = vpack.c.b16 %v42, %v41
  %v48 = vunpack.c.l.b16 %v35
  %v49 = vunpack.c.l.b16 %v36
  %v50 = vunpack.c.l.b16 %v37
  %v51 = vunpack.c.l.b16 %v38
  %v52 = vpack.c.b16 %v49, %v48
  %v53 = vpack.c.b16 %v51, %v50
  %vm56 = vcmask 261120
  %v58 = vsel %vm56, %v43, 0
  %60 = vmatprep.subr.bf16.mxu0 0
  %61 = vmatpush1.bf16.msra.mxu0 %v52
  %62 = vmatprep.subr.bf16.mxu0 0
  %63 = vmatpush1.bf16.msra.mxu0 %v53
  %64 = vmatprep.subr.bf16.mxu0 0
  %65 = vmatpush1.bf16.msra.mxu0 0
  %66 = vmatprep.subr.bf16.mxu0 0
  %67 = vmatpush1.bf16.msra.mxu0 0
  %68 = vmatprep.subr.bf16.mxu0 0
  %69 = vmatpush1.bf16.msra.mxu0 0
  %70 = vmatprep.subr.bf16.mxu0 0
  %71 = vmatpush1.bf16.msra.mxu0 0
  %72 = vmatprep.subr.bf16.mxu0 0
  %73 = vmatpush1.bf16.msra.mxu0 0
  %74 = vmatprep.subr.bf16.mxu0 0
  %75 = vmatpush1.bf16.msra.mxu0 0
  %76 = vmatprep.subr.bf16.mxu0 0
  %77 = vmatpush1.bf16.msra.mxu0 0
  %78 = vmatprep.subr.bf16.mxu0 0
  %79 = vmatpush1.bf16.msra.mxu0 0
  %80 = vmatprep.subr.bf16.mxu0 0
  %81 = vmatpush1.bf16.msra.mxu0 0
  %82 = vmatprep.subr.bf16.mxu0 0
  %83 = vmatpush1.bf16.msra.mxu0 0
  %84 = vmatprep.subr.bf16.mxu0 0
  %85 = vmatpush1.bf16.msra.mxu0 0
  %86 = vmatprep.subr.bf16.mxu0 0
  %87 = vmatpush1.bf16.msra.mxu0 0
  %88 = vmatprep.subr.bf16.mxu0 0
  %89 = vmatpush1.bf16.msra.mxu0 0
  %90 = vmatprep.subr.bf16.mxu0 0
  %91 = vmatpush1.bf16.msra.mxu0 0
  %92 = vmatprep.mubr.bf16.mxu0 0
  %93 = vmatmul.mubr.bf16.gmra.mrb[0].mxu0 %v58
  %v94 = vpop.f32.mrb[0].mxu0
  %v95 = vadd.f32 0.0, %v94
  %v96 = vpop.f32.mrb[0].mxu0
  %v97 = vpop.f32.mrb[0].mxu0
  %v98 = vadd.f32 0.0, %v97
  %v99 = vpop.f32.mrb[0].mxu0
  %100 = vdwg.mxu0
  %v101 = vadd.f32 %v31, %v95
  %v102 = vadd.f32 %v32, %v98
  %103 = vst.msk [vmem:[#allocation2] sm:$0xff] %vm56, %v101
  %104 = vst.msk [vmem:[#allocation2 + $0x8] sm:$0xff] %vm56, %v102
  // Predicated region
  $region30: #{roberta_classifier_forward.13} parent=0 // pred_check
    %p105 = pneg %p24
  $region31: #{roberta_classifier_forward.13} parent=0 // pred_check_branch
    %107 = sbr.rel (%p105) target = $region33
  $region32: #{roberta_classifier_forward.13} parent=0 // pred_region
    %v108 = vld [vmem:[#allocation2] sm:$0xff]
    %v109 = vld [vmem:[#allocation2 + $0x8] sm:$0xff]
    %v110 = vld [vmem:[%s2] sm:$0x1]
    %v112 = vlaneseq
    %v113 = vshrl.u32 %v112, 7
    %v114 = vsub.s32 0, %v113
    %v115 = vrot.slane %v110, %v114
    %v117 = vadd.f32 %v108, %v115
    %v118 = vadd.f32 %v109, %v115
    %v119 = vld [vmem:[%s3] sm:$0xf]
    %v120 = vld [vmem:[%s3 + $0x4] sm:$0xf]
    %v121 = vunpack.c.l.bf16 %v119
    %v122 = vunpack.c.l.bf16 %v120
    %v123 = vadd.f32 %v117, %v121
    %v124 = vadd.f32 %v118, %v122
    %v125 = vsel %vm56, %v123, 0.0
    %126 = vadd.xlane.f32.xlu0 %v125
    %v127 = vpop.xlane.xlu0 %126
    %v128 = vsel %vm56, %v124, 0.0
    %129 = vadd.xlane.f32.xlu0 %v128
    %v130 = vpop.xlane.xlu0 %129
    %v131 = vrcp.pop 32.0
    %v132 = vmul.f32 %v127, %v131
    %v133 = vmul.f32 %v130, %v131
    %v134 = vsub.f32 %v123, %v132
    %v135 = vsub.f32 %v124, %v133
    %v136 = vmul.f32 %v134, %v134
    %v137 = vmul.f32 %v135, %v135
    %v138 = vsel %vm56, %v136, 0.0
    %139 = vadd.xlane.f32.xlu0 %v138
    %v140 = vpop.xlane.xlu0 %139
    %v141 = vsel %vm56, %v137, 0.0
    %142 = vadd.xlane.f32.xlu0 %v141
    %v143 = vpop.xlane.xlu0 %142
    %v144 = vmul.f32 %v140, %v131
    %v145 = vmul.f32 %v143, %v131
    %v146 = vadd.f32 %v144, 1e-05
    %v147 = vadd.f32 %v145, 1e-05
    %v148 = vrsqrt.pop %v146
    %v149 = vrsqrt.pop %v147
    %v150 = vmul.f32 %v134, %v148
    %v151 = vmul.f32 %v135, %v149
    %v152 = vld [vmem:[%s4] sm:$0x1]
    %v154 = vlaneseq
    %v155 = vshrl.u32 %v154, 7
    %v156 = vsub.s32 0, %v155
    %v157 = vrot.slane %v152, %v156
    %v159 = vmul.f32 %v150, %v157
    %v160 = vmul.f32 %v151, %v157
    %v161 = vld [vmem:[%s5] sm:$0x1]
    %v163 = vlaneseq
    %v164 = vshrl.u32 %v163, 7
    %v165 = vsub.s32 0, %v164
    %v166 = vrot.slane %v161, %v165
    %v168 = vadd.f32 %v159, %v166
    %v169 = vadd.f32 %v160, %v166
    %v170 = vpack.c.bf16 %v169, %v168
    %v172 = vunpack.c.l.b16 %v170
    %v173 = vunpack.c.h.b16 %v170
    %v174 = vpack.c.b16 %v172, %v172
    %v175 = vpack.c.b16 %v173, %v173
    %vm178 = vcmask 257024
    %179 = vst.msk [vmem:[%s6] sm:$0xf] %vm178, %v174
    %180 = vst.msk [vmem:[%s6 + $0x4] sm:$0xf] %vm178, %v175
  $region33: #{roberta_classifier_forward.13} parent=0 // pred_fallthru
    _
  // Predicated region
  $region34: #{roberta_classifier_forward.13} parent=0 // pred_check
    _
  $region35: #{roberta_classifier_forward.13} parent=0 // pred_check_branch
    %182 = sbr.rel (0) target = $region37
  $region36: #{roberta_classifier_forward.13} parent=0 // pred_region
    _
  $region37: #{roberta_classifier_forward.13} parent=0 // pred_fallthru
    _
  // Predicated region
  $region38: #{roberta_classifier_forward.13} parent=0 // pred_check
    _
  $region39: #{roberta_classifier_forward.13} parent=0 // pred_check_branch
    %184 = sbr.rel (0) target = $region41
  $region40: #{roberta_classifier_forward.13} parent=0 // pred_region
    _
  $region41: #{roberta_classifier_forward.13} parent=0 // pred_fallthru
    _

// kernel: roberta_classifier_forward.19
$region0: #{roberta_classifier_forward.19}
  #allocation0 [shape = 'u32[]', space=smem, size = 0x4, offset = 0x4, fixed_abs, tag = 'smem constant byte address 0x4 - core index']
  #allocation1 [shape = 'u32[144,128]{1,0:T(1,128)}', space=vmem, size = 0x12000, scoped, tag = 'internal scratch']
  %s0 = inlined_call_operand.vmem [shape: bf16[2,32], index: 0, kind: input, shape index: {}]
  %s1 = inlined_call_operand.vmem [shape: bf16[32,32], index: 1, kind: input, shape index: {}]
  %s2 = inlined_call_operand.vmem [shape: f32[1,32], index: 2, kind: input, shape index: {}]
  %s3 = inlined_call_operand.vmem [shape: bf16[32,128], index: 3, kind: input, shape index: {}]
  %s4 = inlined_call_operand.vmem [shape: f32[1,128], index: 4, kind: input, shape index: {}]
  %s5 = inlined_call_operand.hbm [shape: f32[2,128], index: 5, kind: output, shape index: {}]
  %s6 = sld [smem:[#allocation0]]
  $region30: #{roberta_classifier_forward.19} parent=0
    _
  %s8 = ssub.s32 1, %s6
  %s9 = scalar_select 0, %s8, %s6
  $region1: #{roberta_classifier_forward.19} parent=0
    #allocation2 [shape = 'u8[1024]{0}', space=vmem, size = 0x400, scoped, tag = 'output window, operand 0, single buffered']
    #allocation3 [shape = 's32[1]{0}', space=sflag, size = 0x4, scoped, tag = 'scoped memory for roberta_classifier_forward.19']
    %10 = vsyncpa [#allocation3], 0
    // Predicated region
    $region2: #{roberta_classifier_forward.19} parent=1 // pred_check
      _
    $region3: #{roberta_classifier_forward.19} parent=1 // pred_check_branch
      %12 = sbr.rel (0) target = $region5
    $region4: #{roberta_classifier_forward.19} parent=1 // pred_region
      _
    $region5: #{roberta_classifier_forward.19} parent=1 // pred_fallthru
      _
    // Predicated region
    $region6: #{roberta_classifier_forward.19} parent=1 // pred_check
      _
    $region7: #{roberta_classifier_forward.19} parent=1 // pred_check_branch
      %14 = sbr.rel (0) target = $region9
    $region8: #{roberta_classifier_forward.19} parent=1 // pred_region
      _
    $region9: #{roberta_classifier_forward.19} parent=1 // pred_fallthru
      _
    // Predicated region
    $region10: #{roberta_classifier_forward.19} parent=1 // pred_check
      _
    $region11: #{roberta_classifier_forward.19} parent=1 // pred_check_branch
      %16 = sbr.rel (0) target = $region13
    $region12: #{roberta_classifier_forward.19} parent=1 // pred_region
      _
    $region13: #{roberta_classifier_forward.19} parent=1 // pred_fallthru
      _
    // Predicated region
    $region14: #{roberta_classifier_forward.19} parent=1 // pred_check
      _
    $region15: #{roberta_classifier_forward.19} parent=1 // pred_check_branch
      %18 = sbr.rel (0) target = $region17
    $region16: #{roberta_classifier_forward.19} parent=1 // pred_region
      _
    $region17: #{roberta_classifier_forward.19} parent=1 // pred_fallthru
      _
    // Predicated region
    $region18: #{roberta_classifier_forward.19} parent=1 // pred_check
      _
    $region19: #{roberta_classifier_forward.19} parent=1 // pred_check_branch
      %20 = sbr.rel (0) target = $region21
    $region20: #{roberta_classifier_forward.19} parent=1 // pred_region
      _
    $region21: #{roberta_classifier_forward.19} parent=1 // pred_fallthru
      _
    %v22 = vld [vmem:[%s0] sm:$0x1]
    %v23 = vld [vmem:[%s1] sm:$0xf]
    %v24 = vld [vmem:[%s1 + $0x4] sm:$0xf]
    %v25 = vld [vmem:[%s1 + $0x8] sm:$0xf]
    %v26 = vld [vmem:[%s1 + $0xc] sm:$0xf]
    %v27 = vld [vmem:[%s2] sm:$0x1]
    %v29 = vlaneseq
    %v30 = vshrl.u32 %v29, 7
    %v31 = vsub.s32 0, %v30
    %v32 = vrot.slane %v27, %v31
    %v38 = vunpack.c.l.b16 %v23
    %v39 = vunpack.c.l.b16 %v24
    %v40 = vunpack.c.l.b16 %v25
    %v41 = vunpack.c.l.b16 %v26
    %v42 = vpack.c.b16 %v39, %v38
    %v43 = vpack.c.b16 %v41, %v40
    %vm46 = vcmask 261120
    %v48 = vsel %vm46, %v22, 0
    %50 = vmatprep.subr.bf16.mxu0 0
    %51 = vmatpush1.bf16.msra.mxu0 %v42
    %52 = vmatprep.subr.bf16.mxu0 0
    %53 = vmatpush1.bf16.msra.mxu0 %v43
    %54 = vmatprep.subr.bf16.mxu0 0
    %55 = vmatpush1.bf16.msra.mxu0 0
    %56 = vmatprep.subr.bf16.mxu0 0
    %57 = vmatpush1.bf16.msra.mxu0 0
    %58 = vmatprep.subr.bf16.mxu0 0
    %59 = vmatpush1.bf16.msra.mxu0 0
    %60 = vmatprep.subr.bf16.mxu0 0
    %61 = vmatpush1.bf16.msra.mxu0 0
    %62 = vmatprep.subr.bf16.mxu0 0
    %63 = vmatpush1.bf16.msra.mxu0 0
    %64 = vmatprep.subr.bf16.mxu0 0
    %65 = vmatpush1.bf16.msra.mxu0 0
    %66 = vmatprep.subr.bf16.mxu0 0
    %67 = vmatpush1.bf16.msra.mxu0 0
    %68 = vmatprep.subr.bf16.mxu0 0
    %69 = vmatpush1.bf16.msra.mxu0 0
    %70 = vmatprep.subr.bf16.mxu0 0
    %71 = vmatpush1.bf16.msra.mxu0 0
    %72 = vmatprep.subr.bf16.mxu0 0
    %73 = vmatpush1.bf16.msra.mxu0 0
    %74 = vmatprep.subr.bf16.mxu0 0
    %75 = vmatpush1.bf16.msra.mxu0 0
    %76 = vmatprep.subr.bf16.mxu0 0
    %77 = vmatpush1.bf16.msra.mxu0 0
    %78 = vmatprep.subr.bf16.mxu0 0
    %79 = vmatpush1.bf16.msra.mxu0 0
    %80 = vmatprep.subr.bf16.mxu0 0
    %81 = vmatpush1.bf16.msra.mxu0 0
    %82 = vmatprep.mubr.bf16.mxu0 0
    %83 = vmatmul.mubr.bf16.gmra.mrb[0].mxu0 %v48
    %v84 = vpop.f32.mrb[0].mxu0
    %v85 = vadd.f32 %v32, %v84
    %v86 = vpop.f32.mrb[0].mxu0
    %v87 = vpop.f32.mrb[0].mxu0
    %v88 = vpop.f32.mrb[0].mxu0
    %89 = vdwg.mxu0
    %v90 = vtanh.pop %v85
    %v91 = vpack.c.bf16 %v90, %v90
    %v92 = vld [vmem:[%s3] sm:$0xf]
    %v93 = vld [vmem:[%s3 + $0x4] sm:$0xf]
    %v94 = vld [vmem:[%s3 + $0x8] sm:$0xf]
    %v95 = vld [vmem:[%s3 + $0xc] sm:$0xf]
    %v96 = vld [vmem:[%s4] sm:$0x1]
    %v98 = vlaneseq
    %v99 = vshrl.u32 %v98, 7
    %v100 = vsub.s32 0, %v99
    %v101 = vrot.slane %v96, %v100
    %v107 = vunpack.c.l.b16 %v92
    %v108 = vunpack.c.l.b16 %v93
    %v109 = vunpack.c.l.b16 %v94
    %v110 = vunpack.c.l.b16 %v95
    %v111 = vpack.c.b16 %v108, %v107
    %v112 = vpack.c.b16 %v110, %v109
    %v116 = vsel %vm46, %v91, 0
    %118 = vmatprep.subr.bf16.mxu0 0
    %119 = vmatpush1.bf16.msra.mxu0 %v111
    %120 = vmatprep.subr.bf16.mxu0 0
    %121 = vmatpush1.bf16.msra.mxu0 %v112
    %122 = vmatprep.subr.bf16.mxu0 0
    %123 = vmatpush1.bf16.msra.mxu0 0
    %124 = vmatprep.subr.bf16.mxu0 0
    %125 = vmatpush1.bf16.msra.mxu0 0
    %126 = vmatprep.subr.bf16.mxu0 0
    %127 = vmatpush1.bf16.msra.mxu0 0
    %128 = vmatprep.subr.bf16.mxu0 0
    %129 = vmatpush1.bf16.msra.mxu0 0
    %130 = vmatprep.subr.bf16.mxu0 0
    %131 = vmatpush1.bf16.msra.mxu0 0
    %132 = vmatprep.subr.bf16.mxu0 0
    %133 = vmatpush1.bf16.msra.mxu0 0
    %134 = vmatprep.subr.bf16.mxu0 0
    %135 = vmatpush1.bf16.msra.mxu0 0
    %136 = vmatprep.subr.bf16.mxu0 0
    %137 = vmatpush1.bf16.msra.mxu0 0
    %138 = vmatprep.subr.bf16.mxu0 0
    %139 = vmatpush1.bf16.msra.mxu0 0
    %140 = vmatprep.subr.bf16.mxu0 0
    %141 = vmatpush1.bf16.msra.mxu0 0
    %142 = vmatprep.subr.bf16.mxu0 0
    %143 = vmatpush1.bf16.msra.mxu0 0
    %144 = vmatprep.subr.bf16.mxu0 0
    %145 = vmatpush1.bf16.msra.mxu0 0
    %146 = vmatprep.subr.bf16.mxu0 0
    %147 = vmatpush1.bf16.msra.mxu0 0
    %148 = vmatprep.subr.bf16.mxu0 0
    %149 = vmatpush1.bf16.msra.mxu0 0
    %150 = vmatprep.mubr.bf16.mxu0 0
    %151 = vmatmul.mubr.bf16.gmra.mrb[0].mxu0 %v116
    %v152 = vpop.f32.mrb[0].mxu0
    %v153 = vadd.f32 %v101, %v152
    %v154 = vpop.f32.mrb[0].mxu0
    %v155 = vpop.f32.mrb[0].mxu0
    %v156 = vpop.f32.mrb[0].mxu0
    %157 = vdwg.mxu0
    %158 = vst [vmem:[#allocation2] sm:$0x3] %v153
    // Predicated region
    $region22: #{roberta_classifier_forward.19} parent=1 // pred_check
      _
    $region23: #{roberta_classifier_forward.19} parent=1 // pred_check_branch
      %160 = sbr.rel (0) target = $region25
    $region24: #{roberta_classifier_forward.19} parent=1 // pred_region
      %s162 = ssub.s32 32, 32
      %163 = vsyncadd [#allocation3], %s162
      %s165 = sshll.u32 [#allocation2], 4
      %s166 = int_to_ptr.vmem [resolvable:$true] %s165
      %168 = dma.vmem_to_hbm [thread:$0]  %s166, 32, %s5, [#allocation3]
    $region25: #{roberta_classifier_forward.19} parent=1 // pred_fallthru
      _
    // Predicated region
    $region26: #{roberta_classifier_forward.19} parent=1 // pred_check
      _
    $region27: #{roberta_classifier_forward.19} parent=1 // pred_check_branch
      %170 = sbr.rel (0) target = $region29
    $region28: #{roberta_classifier_forward.19} parent=1 // pred_region
      %171 = dma.done [#allocation3], 32
    $region29: #{roberta_classifier_forward.19} parent=1 // pred_fallthru
      _
    %172 = vsyncpa [#allocation3], 1

// kernel: roberta_classifier_forward.14
$region0: #{roberta_classifier_forward.14}
  #allocation0 [shape = 'u32[]', space=smem, size = 0x4, offset = 0x4, fixed_abs, tag = 'smem constant byte address 0x4 - core index']
  #allocation1 [shape = 'u32[144,128]{1,0:T(1,128)}', space=vmem, size = 0x12000, scoped, tag = 'internal scratch']
  %s0 = inlined_call_operand.vmem [shape: bf16[16,32], index: 0, kind: input, shape index: {}]
  %s1 = inlined_call_operand.vmem [shape: bf16[32,64], index: 1, kind: input, shape index: {}]
  %s2 = inlined_call_operand.vmem [shape: f32[1,64], index: 2, kind: input, shape index: {}]
  %s3 = inlined_call_operand.vmem [shape: bf16[64,32], index: 3, kind: input, shape index: {}]
  %s4 = inlined_call_operand.vmem [shape: f32[1,32], index: 4, kind: input, shape index: {}]
  %s5 = inlined_call_operand.vmem [shape: f32[1,32], index: 5, kind: input, shape index: {}]
  %s6 = inlined_call_operand.vmem [shape: f32[1,32], index: 6, kind: input, shape index: {}]
  %s7 = inlined_call_operand.vmem [shape: bf16[16,32], index: 7, kind: output, shape index: {}]
  %s8 = sld [smem:[#allocation0]]
  $region38: #{roberta_classifier_forward.14} parent=0
    _
  %s10 = ssub.s32 1, %s8
  %s11 = scalar_select 0, %s10, %s8
  // Predicated region
  $region2: #{roberta_classifier_forward.14} parent=0 // pred_check
    _
  $region3: #{roberta_classifier_forward.14} parent=0 // pred_check_branch
    %13 = sbr.rel (0) target = $region5
  $region4: #{roberta_classifier_forward.14} parent=0 // pred_region
    _
  $region5: #{roberta_classifier_forward.14} parent=0 // pred_fallthru
    _
  // Predicated region
  $region6: #{roberta_classifier_forward.14} parent=0 // pred_check
    _
  $region7: #{roberta_classifier_forward.14} parent=0 // pred_check_branch
    %15 = sbr.rel (0) target = $region9
  $region8: #{roberta_classifier_forward.14} parent=0 // pred_region
    _
  $region9: #{roberta_classifier_forward.14} parent=0 // pred_fallthru
    _
  // Predicated region
  $region10: #{roberta_classifier_forward.14} parent=0 // pred_check
    _
  $region11: #{roberta_classifier_forward.14} parent=0 // pred_check_branch
    %17 = sbr.rel (0) target = $region13
  $region12: #{roberta_classifier_forward.14} parent=0 // pred_region
    _
  $region13: #{roberta_classifier_forward.14} parent=0 // pred_fallthru
    _
  // Predicated region
  $region14: #{roberta_classifier_forward.14} parent=0 // pred_check
    _
  $region15: #{roberta_classifier_forward.14} parent=0 // pred_check_branch
    %19 = sbr.rel (0) target = $region17
  $region16: #{roberta_classifier_forward.14} parent=0 // pred_region
    _
  $region17: #{roberta_classifier_forward.14} parent=0 // pred_fallthru
    _
  // Predicated region
  $region18: #{roberta_classifier_forward.14} parent=0 // pred_check
    _
  $region19: #{roberta_classifier_forward.14} parent=0 // pred_check_branch
    %21 = sbr.rel (0) target = $region21
  $region20: #{roberta_classifier_forward.14} parent=0 // pred_region
    _
  $region21: #{roberta_classifier_forward.14} parent=0 // pred_fallthru
    _
  // Predicated region
  $region22: #{roberta_classifier_forward.14} parent=0 // pred_check
    _
  $region23: #{roberta_classifier_forward.14} parent=0 // pred_check_branch
    %23 = sbr.rel (0) target = $region25
  $region24: #{roberta_classifier_forward.14} parent=0 // pred_region
    _
  $region25: #{roberta_classifier_forward.14} parent=0 // pred_fallthru
    _
  // Predicated region
  $region26: #{roberta_classifier_forward.14} parent=0 // pred_check
    _
  $region27: #{roberta_classifier_forward.14} parent=0 // pred_check_branch
    %25 = sbr.rel (0) target = $region29
  $region28: #{roberta_classifier_forward.14} parent=0 // pred_region
    _
  $region29: #{roberta_classifier_forward.14} parent=0 // pred_fallthru
    _
  %v27 = vld [vmem:[%s0] sm:$0xf]
  %v28 = vld [vmem:[%s0 + $0x4] sm:$0xf]
  %v29 = vld [vmem:[%s1] sm:$0xf]
  %v30 = vld [vmem:[%s1 + $0x4] sm:$0xf]
  %v31 = vld [vmem:[%s1 + $0x8] sm:$0xf]
  %v32 = vld [vmem:[%s1 + $0xc] sm:$0xf]
  %v33 = vld [vmem:[%s2] sm:$0x1]
  %v35 = vlaneseq
  %v36 = vshrl.u32 %v35, 7
  %v37 = vsub.s32 0, %v36
  %v38 = vrot.slane %v33, %v37
  %v42 = vunpack.c.l.b16 %v27
  %v43 = vunpack.c.l.b16 %v28
  %v44 = vpack.c.b16 %v43, %v42
  %v49 = vunpack.c.l.b16 %v29
  %v50 = vunpack.c.l.b16 %v30
  %v51 = vunpack.c.l.b16 %v31
  %v52 = vunpack.c.l.b16 %v32
  %v53 = vpack.c.b16 %v50, %v49
  %v54 = vpack.c.b16 %v52, %v51
  %vm57 = vcmask 261120
  %v59 = vsel %vm57, %v44, 0
  %61 = vmatprep.subr.bf16.mxu0 0
  %62 = vmatpush1.bf16.msra.mxu0 %v53
  %63 = vmatprep.subr.bf16.mxu0 0
  %64 = vmatpush1.bf16.msra.mxu0 %v54
  %65 = vmatprep.subr.bf16.mxu0 0
  %66 = vmatpush1.bf16.msra.mxu0 0
  %67 = vmatprep.subr.bf16.mxu0 0
  %68 = vmatpush1.bf16.msra.mxu0 0
  %69 = vmatprep.subr.bf16.mxu0 0
  %70 = vmatpush1.bf16.msra.mxu0 0
  %71 = vmatprep.subr.bf16.mxu0 0
  %72 = vmatpush1.bf16.msra.mxu0 0
  %73 = vmatprep.subr.bf16.mxu0 0
  %74 = vmatpush1.bf16.msra.mxu0 0
  %75 = vmatprep.subr.bf16.mxu0 0
  %76 = vmatpush1.bf16.msra.mxu0 0
  %77 = vmatprep.subr.bf16.mxu0 0
  %78 = vmatpush1.bf16.msra.mxu0 0
  %79 = vmatprep.subr.bf16.mxu0 0
  %80 = vmatpush1.bf16.msra.mxu0 0
  %81 = vmatprep.subr.bf16.mxu0 0
  %82 = vmatpush1.bf16.msra.mxu0 0
  %83 = vmatprep.subr.bf16.mxu0 0
  %84 = vmatpush1.bf16.msra.mxu0 0
  %85 = vmatprep.subr.bf16.mxu0 0
  %86 = vmatpush1.bf16.msra.mxu0 0
  %87 = vmatprep.subr.bf16.mxu0 0
  %88 = vmatpush1.bf16.msra.mxu0 0
  %89 = vmatprep.subr.bf16.mxu0 0
  %90 = vmatpush1.bf16.msra.mxu0 0
  %91 = vmatprep.subr.bf16.mxu0 0
  %92 = vmatpush1.bf16.msra.mxu0 0
  %93 = vmatprep.mubr.bf16.mxu0 0
  %94 = vmatmul.mubr.bf16.gmra.mrb[0].mxu0 %v59
  %v95 = vpop.f32.mrb[0].mxu0
  %v96 = vadd.f32 %v38, %v95
  %v97 = vpop.f32.mrb[0].mxu0
  %v98 = vpop.f32.mrb[0].mxu0
  %v99 = vadd.f32 %v38, %v98
  %v100 = vpop.f32.mrb[0].mxu0
  %101 = vdwg.mxu0
  %v102 = vmul.f32 %v96, %v96
  %v103 = vmul.f32 %v99, %v99
  %v104 = vmul.f32 %v96, %v102
  %v105 = vmul.f32 %v99, %v103
  %v106 = vmul.f32 %v104, 0.044715
  %v107 = vmul.f32 %v105, 0.044715
  %v108 = vadd.f32 %v96, %v106
  %v109 = vadd.f32 %v99, %v107
  %v110 = vmul.f32 %v108, 0.7978846
  %v111 = vmul.f32 %v109, 0.7978846
  %v112 = vtanh.pop %v110
  %v113 = vtanh.pop %v111
  %v114 = vadd.f32 %v112, 1.0
  %v115 = vadd.f32 %v113, 1.0
  %v116 = vmul.f32 %v114, 0.5
  %v117 = vmul.f32 %v115, 0.5
  %v118 = vmul.f32 %v96, %v116
  %v119 = vmul.f32 %v99, %v117
  %v120 = vpack.c.bf16 %v119, %v118
  %v121 = vld [vmem:[%s3] sm:$0xf]
  %v122 = vld [vmem:[%s3 + $0x4] sm:$0xf]
  %v123 = vld [vmem:[%s3 + $0x8] sm:$0xf]
  %v124 = vld [vmem:[%s3 + $0xc] sm:$0xf]
  %v125 = vld [vmem:[%s3 + $0x10] sm:$0xf]
  %v126 = vld [vmem:[%s3 + $0x14] sm:$0xf]
  %v127 = vld [vmem:[%s3 + $0x18] sm:$0xf]
  %v128 = vld [vmem:[%s3 + $0x1c] sm:$0xf]
  %v129 = vld [vmem:[%s4] sm:$0x1]
  %v131 = vlaneseq
  %v132 = vshrl.u32 %v131, 7
  %v133 = vsub.s32 0, %v132
  %v134 = vrot.slane %v129, %v133
  %v144 = vunpack.c.l.b16 %v121
  %v145 = vunpack.c.l.b16 %v122
  %v146 = vunpack.c.l.b16 %v123
  %v147 = vunpack.c.l.b16 %v124
  %v148 = vunpack.c.l.b16 %v125
  %v149 = vunpack.c.l.b16 %v126
  %v150 = vunpack.c.l.b16 %v127
  %v151 = vunpack.c.l.b16 %v128
  %v152 = vpack.c.b16 %v145, %v144
  %v153 = vpack.c.b16 %v147, %v146
  %v154 = vpack.c.b16 %v149, %v148
  %v155 = vpack.c.b16 %v151, %v150
  %vm160 = vcmask 523264
  %v162 = vsel %vm160, %v120, 0
  %164 = vmatprep.subr.bf16.mxu0 0
  %165 = vmatpush1.bf16.msra.mxu0 %v152
  %166 = vmatprep.subr.bf16.mxu0 0
  %167 = vmatpush1.bf16.msra.mxu0 %v153
  %168 = vmatprep.subr.bf16.mxu0 0
  %169 = vmatpush1.bf16.msra.mxu0 %v154
  %170 = vmatprep.subr.bf16.mxu0 0
  %171 = vmatpush1.bf16.msra.mxu0 %v155
  %172 = vmatprep.subr.bf16.mxu0 0
  %173 = vmatpush1.bf16.msra.mxu0 0
  %174 = vmatprep.subr.bf16.mxu0 0
  %175 = vmatpush1.bf16.msra.mxu0 0
  %176 = vmatprep.subr.bf16.mxu0 0
  %177 = vmatpush1.bf16.msra.mxu0 0
  %178 = vmatprep.subr.bf16.mxu0 0
  %179 = vmatpush1.bf16.msra.mxu0 0
  %180 = vmatprep.subr.bf16.mxu0 0
  %181 = vmatpush1.bf16.msra.mxu0 0
  %182 = vmatprep.subr.bf16.mxu0 0
  %183 = vmatpush1.bf16.msra.mxu0 0
  %184 = vmatprep.subr.bf16.mxu0 0
  %185 = vmatpush1.bf16.msra.mxu0 0
  %186 = vmatprep.subr.bf16.mxu0 0
  %187 = vmatpush1.bf16.msra.mxu0 0
  %188 = vmatprep.subr.bf16.mxu0 0
  %189 = vmatpush1.bf16.msra.mxu0 0
  %190 = vmatprep.subr.bf16.mxu0 0
  %191 = vmatpush1.bf16.msra.mxu0 0
  %192 = vmatprep.subr.bf16.mxu0 0
  %193 = vmatpush1.bf16.msra.mxu0 0
  %194 = vmatprep.subr.bf16.mxu0 0
  %195 = vmatpush1.bf16.msra.mxu0 0
  %196 = vmatprep.mubr.bf16.mxu0 0
  %197 = vmatmul.mubr.bf16.gmra.mrb[0].mxu0 %v162
  %v198 = vpop.f32.mrb[0].mxu0
  %v199 = vadd.f32 %v134, %v198
  %v200 = vpop.f32.mrb[0].mxu0
  %v201 = vpop.f32.mrb[0].mxu0
  %v202 = vadd.f32 %v134, %v201
  %v203 = vpop.f32.mrb[0].mxu0
  %204 = vdwg.mxu0
  %v205 = vunpack.c.l.bf16 %v27
  %v206 = vunpack.c.l.bf16 %v28
  %v207 = vadd.f32 %v199, %v205
  %v208 = vadd.f32 %v202, %v206
  %v209 = vsel %vm57, %v207, 0.0
  %210 = vadd.xlane.f32.xlu0 %v209
  %v211 = vpop.xlane.xlu0 %210
  %v212 = vsel %vm57, %v208, 0.0
  %213 = vadd.xlane.f32.xlu0 %v212
  %v214 = vpop.xlane.xlu0 %213
  %v215 = vrcp.pop 32.0
  %v216 = vmul.f32 %v211, %v215
  %v217 = vmul.f32 %v214, %v215
  %v218 = vsub.f32 %v207, %v216
  %v219 = vsub.f32 %v208, %v217
  %v220 = vmul.f32 %v218, %v218
  %v221 = vmul.f32 %v219, %v219
  %v222 = vsel %vm57, %v220, 0.0
  %223 = vadd.xlane.f32.xlu0 %v222
  %v224 = vpop.xlane.xlu0 %223
  %v225 = vsel %vm57, %v221, 0.0
  %226 = vadd.xlane.f32.xlu0 %v225
  %v227 = vpop.xlane.xlu0 %226
  %v228 = vmul.f32 %v224, %v215
  %v229 = vmul.f32 %v227, %v215
  %v230 = vadd.f32 %v228, 1e-05
  %v231 = vadd.f32 %v229, 1e-05
  %v232 = vrsqrt.pop %v230
  %v233 = vrsqrt.pop %v231
  %v234 = vmul.f32 %v218, %v232
  %v235 = vmul.f32 %v219, %v233
  %v236 = vld [vmem:[%s5] sm:$0x1]
  %v238 = vlaneseq
  %v239 = vshrl.u32 %v238, 7
  %v240 = vsub.s32 0, %v239
  %v241 = vrot.slane %v236, %v240
  %v243 = vmul.f32 %v234, %v241
  %v244 = vmul.f32 %v235, %v241
  %v245 = vld [vmem:[%s6] sm:$0x1]
  %v247 = vlaneseq
  %v248 = vshrl.u32 %v247, 7
  %v249 = vsub.s32 0, %v248
  %v250 = vrot.slane %v245, %v249
  %v252 = vadd.f32 %v243, %v250
  %v253 = vadd.f32 %v244, %v250
  %v254 = vpack.c.bf16 %v253, %v252
  %v256 = vunpack.c.l.b16 %v254
  %v257 = vunpack.c.h.b16 %v254
  %v258 = vpack.c.b16 %v256, %v256
  %v259 = vpack.c.b16 %v257, %v257
  %vm262 = vcmask 257024
  %263 = vst.msk [vmem:[%s7] sm:$0xf] %vm262, %v258
  %264 = vst.msk [vmem:[%s7 + $0x4] sm:$0xf] %vm262, %v259
  // Predicated region
  $region30: #{roberta_classifier_forward.14} parent=0 // pred_check
    _
  $region31: #{roberta_classifier_forward.14} parent=0 // pred_check_branch
    %266 = sbr.rel (0) target = $region33
  $region32: #{roberta_classifier_forward.14} parent=0 // pred_region
    _
  $region33: #{roberta_classifier_forward.14} parent=0 // pred_fallthru
    _
  // Predicated region
  $region34: #{roberta_classifier_forward.14} parent=0 // pred_check
    _
  $region35: #{roberta_classifier_forward.14} parent=0 // pred_check_branch
    %268 = sbr.rel (0) target = $region37
  $region36: #{roberta_classifier_forward.14} parent=0 // pred_region
    _
  $region37: #{roberta_classifier_forward.14} parent=0 // pred_fallthru
    _

</llo_original>
